<compile_context>
chip_gen: v6e
topology: v6e:2x2x1
jax: 0.10.0
libtpu: 0.0.40
codegen_flags: <defaults>
</compile_context>

<pallas_src>
import functools

import jax
import jax.numpy as jnp
from jax.experimental import pallas as pl
from jax.experimental.pallas import tpu as pltpu


# --------------------------------------------------------------------------
# Tile / VMEM planning
# --------------------------------------------------------------------------
def _largest_tile(dim, target, multiple):
    """Largest t <= target with t % multiple == 0 and dim % t == 0, else dim."""
    t = (min(dim, target) // multiple) * multiple
    while t >= multiple:
        if dim % t == 0:
            return t
        t -= multiple
    return dim


def _tile_candidates(dim, multiple, cap):
    """Divisors of dim that are multiples of `multiple` (<= cap), descending."""
    cands = [t for t in range(multiple, min(dim, cap) + 1, multiple) if dim % t == 0]
    if dim <= cap:
        cands.append(dim)          # full dim is always a legal block
    if not cands:
        cands = [dim]
    return sorted(set(cands), reverse=True)


def _vmem_budget_bytes():
    """Generation-aware VMEM budget (leave headroom for compiler scratch)."""
    cap = 64 * 2 ** 20             # conservative default (v7x per-TC VMEM)
    try:
        cap = int(pltpu.get_tpu_info().vmem_capacity_bytes)
    except Exception:
        pass
    # ~75% of physical: ~48 MiB on v7x, ~96 MiB (capped at 100) on v5e/v6e.
    return int(min(cap * 3 // 4, 100 * 2 ** 20))


def _vmem_need_bytes(B, S, H, tS, tN):
    """Per-kernel VMEM footprint: double buffers + residents + scratch + out."""
    residents = 1024 * 128 * 2 + (1024 + 128 + 128 + 1) * 4      # w3 bf16 + f32 biases/w4
    scratch = B * H * 4 + B * H * 2 + B * 1024 * 4               # pool_acc, pooled_bf, acc2
    out = 2 * B * 4
    h_db = 2 * B * tS * H * 2                                    # hidden-state double buffer
    w_db = 2 * (H * tN * 2 + tN * 1024 * 2)                      # w1 slab + w2 slab double buffers
    return residents + scratch + out + h_db + w_db


def _select_tiles(B, S, H, budget, seq_tile=None, n_tile=None):
    """Pick (tS, tN). Explicit overrides respected; otherwise fill the budget."""
    if seq_tile is not None or n_tile is not None:
        tS = _largest_tile(S, seq_tile if seq_tile is not None else S, 16)
        tN = _largest_tile(H, n_tile if n_tile is not None else H, 128)
        return tS, tN
    tS_cands = _tile_candidates(S, 16, 2048)
    tN_cands = _tile_candidates(H, 128, 4096)
    si = ni = 0
    tS, tN = tS_cands[0], tN_cands[0]
    # Shrink tS first: the hidden-state double buffer is dead weight in phase 2.
    while _vmem_need_bytes(B, S, H, tS, tN) > budget:
        if si + 1 < len(tS_cands):
            si += 1
            tS = tS_cands[si]
        elif ni + 1 < len(tN_cands):
            ni += 1
            tN = tN_cands[ni]
        else:
            break
    return tS, tN


# --------------------------------------------------------------------------
# One-time parameter preparation (head is frozen -> amortized)
# --------------------------------------------------------------------------
def prepare_params(params, n_tile):
    """Fold b1 into b2, pre-tile w1 into contiguous slabs, cast to bf16."""
    H = params["w1"].shape[0]
    nN = H // n_tile
    w1_bf = params["w1"].astype(jnp.bfloat16)
    # (H, H) -> (nN, H, tN): slab k holds columns [k*tN, (k+1)*tN), contiguous.
    w1_tiled = jnp.transpose(w1_bf.reshape(H, nN, n_tile), (1, 0, 2))
    w2_f32 = params["w2"].astype(jnp.float32)
    b2_fold = jnp.dot(params["b1"].astype(jnp.float32), w2_f32) \
        + params["b2"].astype(jnp.float32)                       # (1, 1024) f32
    return (
        w1_tiled,                                                # (nN, H, tN) bf16
        params["w2"].astype(jnp.bfloat16),                       # (H, 1024) bf16
        b2_fold,                                                 # (1, 1024) f32
        params["w3"].astype(jnp.bfloat16),                       # (1024, 128) bf16
        params["b3"].astype(jnp.float32),                        # (1, 128) f32
        params["w4"].astype(jnp.float32),                        # (128, 1) f32
        params["b4"].astype(jnp.float32),                        # (1, 1) f32
    )


# --------------------------------------------------------------------------
# Kernel
# --------------------------------------------------------------------------
def _make_kernel(seq_len, num_s_tiles, num_n_tiles):
    inv_s = 1.0 / float(seq_len)
    last_step = num_s_tiles + num_n_tiles - 1

    def kernel(h_ref, w1_ref, w2_ref, b2_ref, w3_ref, b3_ref, w4_ref, b4_ref,
               out_ref, pool_acc, pooled_bf, acc2):
        i = pl.program_id(0)

        @pl.when(i == 0)
        def _init():
            pool_acc[...] = jnp.zeros_like(pool_acc)
            acc2[...] = jnp.zeros_like(acc2)

        # ---- phase 1: f32 mean-pool accumulation over sequence tiles ----
        @pl.when(i < num_s_tiles)
        def _pool():
            h = h_ref[...]                                          # (B, tS, H) bf16
            pool_acc[...] += jnp.sum(h.astype(jnp.float32), axis=1)

        # ---- finalize the pooled vector once (hoisted out of the slab loop) ----
        @pl.when(i == num_s_tiles)
        def _finalize_pool():
            pooled_bf[...] = (pool_acc[...] * inv_s).astype(jnp.bfloat16)

        # ---- phase 2: fused layer1/layer2 over weight slabs ----
        @pl.when(i >= num_s_tiles)
        def _mlp_slab():
            a1 = jnp.dot(pooled_bf[...], w1_ref[...],
                         preferred_element_type=jnp.float32)        # (B, tN)  (b1 folded)
            acc2[...] += jnp.dot(a1.astype(jnp.bfloat16), w2_ref[...],
                                 preferred_element_type=jnp.float32)  # (B, 1024)

            @pl.when(i == last_step)
            def _tail():
                y2 = jnp.maximum(acc2[...] + b2_ref[...], 0.0)       # (B, 1024)
                y3 = jnp.dot(y2.astype(jnp.bfloat16), w3_ref[...],
                             preferred_element_type=jnp.float32) + b3_ref[...]
                y3 = jnp.maximum(y3, 0.0)                            # (B, 128)
                y4 = jnp.dot(y3, w4_ref[...],
                             preferred_element_type=jnp.float32) + b4_ref[...]
                out_ref[...] = jnp.maximum(y4, 0.0)                  # (B, 1)

    return kernel


@functools.partial(jax.jit, static_argnames=("tS", "tN", "vmem_limit"))
def _forward(hidden_states, w1t, w2, b2f, w3, b3, w4, b4, *, tS, tN, vmem_limit):
    B, S, H = hidden_states.shape
    nS = S // tS
    nN = H // tN
    kernel = _make_kernel(S, nS, nN)

    # Index maps: sequence tiles for steps [0, nS); weight slabs for steps
    # [nS, nS + nN). Clamped indices repeat the previous block index, so unused
    # blocks are not re-DMA'd (and slab 0 is prefetched during pooling).
    def h_map(i):
        return (0, jnp.minimum(i, nS - 1), 0)

    def w1_map(i):
        return (jnp.maximum(i - nS, 0), 0, 0)

    def w2_map(i):
        return (jnp.maximum(i - nS, 0), 0)

    resident = pl.BlockSpec(memory_space=pltpu.MemorySpace.VMEM)

    flops = 2 * B * (S * H + H * H + H * 1024 + 1024 * 128 + 128)
    bytes_accessed = (B * S * H * 2 + H * H * 2 + H * 1024 * 2
                      + 1024 * 128 * 2 + (1024 + 128 + 128 + 1) * 4 + B * 4)

    return pl.pallas_call(
        kernel,
        out_shape=jax.ShapeDtypeStruct((B, 1), jnp.float32),
        grid=(nS + nN,),
        in_specs=[
            pl.BlockSpec((B, tS, H), h_map),       # hidden states, streamed over S
            pl.BlockSpec((None, H, tN), w1_map),   # pre-tiled contiguous w1 slab (bf16)
            pl.BlockSpec((tN, 1024), w2_map),      # w2 row slab (bf16, contiguous)
            resident,                              # folded b2' (f32, VMEM-resident)
            resident,                              # w3 (bf16, VMEM-resident)
            resident,                              # b3 (f32)
            resident,                              # w4 (f32)
            resident,                              # b4 (f32)
        ],
        out_specs=pl.BlockSpec((B, 1), lambda i: (0, 0)),
        scratch_shapes=[
            pltpu.VMEM((B, H), jnp.float32),       # pooled-sum accumulator
            pltpu.VMEM((B, H), jnp.bfloat16),      # normalized pooled vector (bf16)
            pltpu.VMEM((B, 1024), jnp.float32),    # fused layer1@layer2 accumulator
        ],
        compiler_params=pltpu.CompilerParams(
            dimension_semantics=("arbitrary",),    # carried accumulators across grid
            vmem_limit_bytes=vmem_limit,
        ),
        cost_estimate=pl.CostEstimate(flops=flops, transcendentals=0,
                                      bytes_accessed=bytes_accessed),
    )(hidden_states, w1t, w2, b2f, w3, b3, w4, b4)


def filter_model_forward(hidden_states, params, *, seq_tile=None, n_tile=None):
    """hidden_states: (B, S, H) bf16; params: dict of f32 MLP weights/biases.

    Tile sizes default to a generation-aware VMEM budget. Parameter
    preparation (bias fold / pre-tiling / casts) is one-time work for a frozen
    head; done here per call only for script simplicity.
    """
    B, S, H = hidden_states.shape
    budget = _vmem_budget_bytes()
    tS, tN = _select_tiles(B, S, H, budget, seq_tile, n_tile)
    prepared = prepare_params(params, tN)
    need = _vmem_need_bytes(B, S, H, tS, tN)
    vmem_limit = int(min(budget, max(32 * 2 ** 20, int(need * 1.5))))
    vmem_limit = max(vmem_limit, int(need * 1.2))
    return _forward(hidden_states, *prepared, tS=tS, tN=tN, vmem_limit=vmem_limit)


# --------------------------------------------------------------------------
# Reference + params
# --------------------------------------------------------------------------
def _xavier_uniform(key, fan_in, fan_out):
    limit = (6.0 / (fan_in + fan_out)) ** 0.5
    return jax.random.uniform(key, (fan_in, fan_out), jnp.float32, -limit, limit)


def _bias_init(key, fan_in, fan_out):
    # PyTorch Linear default bias init: U(-1/sqrt(fan_in), 1/sqrt(fan_in)).
    bound = 1.0 / (fan_in ** 0.5)
    return jax.random.uniform(key, (1, fan_out), jnp.float32, -bound, bound)


def make_params(key, hidden_size):
    dims = [(hidden_size, hidden_size), (hidden_size, 1024), (1024, 128), (128, 1)]
    keys = jax.random.split(key, 2 * len(dims))
    params = {}
    for idx, (fi, fo) in enumerate(dims):
        params[f"w{idx + 1}"] = _xavier_uniform(keys[2 * idx], fi, fo)
        params[f"b{idx + 1}"] = _bias_init(keys[2 * idx + 1], fi, fo)
    return params


def reference_forward(hidden_states, params):
    """Pure-JAX reference mirroring the kernel's precision choices."""
    S = hidden_states.shape[1]
    pooled = (jnp.sum(hidden_states.astype(jnp.float32), axis=1) * (1.0 / S))
    x = pooled.astype(jnp.bfloat16)
    a1 = jnp.dot(x, params["w1"].astype(jnp.bfloat16),
                 preferred_element_type=jnp.float32)
    b2_fold = jnp.dot(params["b1"], params["w2"]) + params["b2"]        # f32 fold
    y2 = jnp.dot(a1.astype(jnp.bfloat16), params["w2"].astype(jnp.bfloat16),
                 preferred_element_type=jnp.float32) + b2_fold
    y2 = jnp.maximum(y2, 0.0)
    y3 = jnp.dot(y2.astype(jnp.bfloat16), params["w3"].astype(jnp.bfloat16),
                 preferred_element_type=jnp.float32) + params["b3"]
    y3 = jnp.maximum(y3, 0.0)
    y4 = jnp.dot(y3, params["w4"], preferred_element_type=jnp.float32) + params["b4"]
    return jnp.maximum(y4, 0.0)


if __name__ == "__main__":
    B, S, H = 2, 32, 256  # small llama-like shapes (H multiple of 128)

    key = jax.random.PRNGKey(0)
    k_h, k_p = jax.random.split(key)
    hidden_states = jax.random.normal(k_h, (B, S, H), jnp.float32).astype(jnp.bfloat16)
    params = make_params(k_p, H)

    ref = reference_forward(hidden_states, params)

    # Multi-step path: 2 sequence tiles + 2 weight slabs (grid of 4 steps).
    score_tiled = filter_model_forward(hidden_states, params, seq_tile=16, n_tile=128)
    score_tiled = jax.block_until_ready(score_tiled)
    # Budget-derived tile path (single tile per phase at this toy size).
    score_auto = filter_model_forward(hidden_states, params)
    score_auto = jax.block_until_ready(score_auto)

    assert score_tiled.shape == (B, 1), score_tiled.shape
    assert jnp.allclose(score_tiled, ref, atol=1e-2, rtol=1e-2), (score_tiled, ref)
    assert jnp.allclose(score_auto, ref, atol=1e-2, rtol=1e-2), (score_auto, ref)

    print("KERNEL_OK")
</pallas_src>

<mosaic_0001>
module attributes {stable_mosaic.version = 11 : i64} {
  func.func @kernel(%arg0: i32, %arg1: memref<2x16x256xbf16, #tpu.memory_space<vmem>>, %arg2: memref<1x256x128xbf16, #tpu.memory_space<vmem>>, %arg3: memref<128x1024xbf16, #tpu.memory_space<vmem>>, %arg4: memref<1x1024xf32, #tpu.memory_space<vmem>>, %arg5: memref<1024x128xbf16, #tpu.memory_space<vmem>>, %arg6: memref<1x128xf32, #tpu.memory_space<vmem>>, %arg7: memref<128x1xf32, #tpu.memory_space<vmem>>, %arg8: memref<1x1xf32, #tpu.memory_space<vmem>>, %arg9: memref<2x1xf32, #tpu.memory_space<vmem>>, %arg10: memref<2x256xf32, #tpu.memory_space<vmem>>, %arg11: memref<2x256xbf16, #tpu.memory_space<vmem>>, %arg12: memref<2x1024xf32, #tpu.memory_space<vmem>>) attributes {dimension_semantics = [#tpu.dimension_semantics<arbitrary>], iteration_bounds = array<i64: 4>, scalar_prefetch = 0 : i64, scratch_operands = 3 : i64, tpu.core_type = #tpu.core_type<tc>, window_params = [{transform_indices = @transform_0, window_bounds = array<i64: 2, 16, 256>}, {transform_indices = @transform_1, window_bounds = array<i64: 1, 256, 128>}, {transform_indices = @transform_2, window_bounds = array<i64: 128, 1024>}, {pipeline_mode = #tpu.pipeline_mode<synchronous>, transform_indices = @transform_3, window_bounds = array<i64: 1, 1024>}, {pipeline_mode = #tpu.pipeline_mode<synchronous>, transform_indices = @transform_4, window_bounds = array<i64: 1024, 128>}, {pipeline_mode = #tpu.pipeline_mode<synchronous>, transform_indices = @transform_5, window_bounds = array<i64: 1, 128>}, {pipeline_mode = #tpu.pipeline_mode<synchronous>, transform_indices = @transform_6, window_bounds = array<i64: 128, 1>}, {pipeline_mode = #tpu.pipeline_mode<synchronous>, transform_indices = @transform_7, window_bounds = array<i64: 1, 1>}, {pipeline_mode = #tpu.pipeline_mode<synchronous>, transform_indices = @transform_8, window_bounds = array<i64: 2, 1>}]} {
    %c0_i32 = arith.constant 0 : i32
    %0 = arith.cmpi eq, %arg0, %c0_i32 : i32
    %1 = arith.extui %0 : i1 to i32
    %c0_i32_0 = arith.constant 0 : i32
    %2 = arith.cmpi ne, %1, %c0_i32_0 : i32
    scf.if %2 {
      %cst = arith.constant 0.000000e+00 : f32
      %12 = vector.broadcast %cst : f32 to vector<2x256xf32>
      %c0 = arith.constant 0 : index
      %c0_6 = arith.constant 0 : index
      %13 = vector.load %arg10[%c0, %c0_6] : memref<2x256xf32, #tpu.memory_space<vmem>>, vector<2x256xf32>
      tpu.vector_store %arg10[%c0, %c0_6], %12 {strides = array<i32>} : memref<2x256xf32, #tpu.memory_space<vmem>>, vector<2x256xf32>,
      %cst_7 = arith.constant 0.000000e+00 : f32
      %14 = vector.broadcast %cst_7 : f32 to vector<2x1024xf32>
      %c0_8 = arith.constant 0 : index
      %c0_9 = arith.constant 0 : index
      %15 = vector.load %arg12[%c0_8, %c0_9] : memref<2x1024xf32, #tpu.memory_space<vmem>>, vector<2x1024xf32>
      tpu.vector_store %arg12[%c0_8, %c0_9], %14 {strides = array<i32>} : memref<2x1024xf32, #tpu.memory_space<vmem>>, vector<2x1024xf32>,
    } else {
    }
    %c2_i32 = arith.constant 2 : i32
    %3 = arith.cmpi slt, %arg0, %c2_i32 : i32
    %4 = arith.extui %3 : i1 to i32
    %c0_i32_1 = arith.constant 0 : i32
    %5 = arith.cmpi ne, %4, %c0_i32_1 : i32
    scf.if %5 {
      %c0 = arith.constant 0 : index
      %c0_6 = arith.constant 0 : index
      %c0_7 = arith.constant 0 : index
      %12 = vector.load %arg1[%c0, %c0_6, %c0_7] : memref<2x16x256xbf16, #tpu.memory_space<vmem>>, vector<2x16x256xbf16>
      %c0_8 = arith.constant 0 : index
      %c0_9 = arith.constant 0 : index
      %13 = vector.load %arg10[%c0_8, %c0_9] : memref<2x256xf32, #tpu.memory_space<vmem>>, vector<2x256xf32>
      %14 = arith.extf %12 : vector<2x16x256xbf16> to vector<2x16x256xf32>
      %cst = arith.constant dense<0.000000e+00> : vector<2x256xf32>
      %15 = vector.multi_reduction <add>, %14, %cst [1] : vector<2x16x256xf32> to vector<2x256xf32>
      %16 = arith.addf %13, %15 : vector<2x256xf32>
      %c0_10 = arith.constant 0 : index
      %c0_11 = arith.constant 0 : index
      %17 = vector.load %arg10[%c0_10, %c0_11] : memref<2x256xf32, #tpu.memory_space<vmem>>, vector<2x256xf32>
      tpu.vector_store %arg10[%c0_10, %c0_11], %16 {strides = array<i32>} : memref<2x256xf32, #tpu.memory_space<vmem>>, vector<2x256xf32>,
    } else {
    }
    %c2_i32_2 = arith.constant 2 : i32
    %6 = arith.cmpi eq, %arg0, %c2_i32_2 : i32
    %7 = arith.extui %6 : i1 to i32
    %c0_i32_3 = arith.constant 0 : i32
    %8 = arith.cmpi ne, %7, %c0_i32_3 : i32
    scf.if %8 {
      %c0 = arith.constant 0 : index
      %c0_6 = arith.constant 0 : index
      %12 = vector.load %arg10[%c0, %c0_6] : memref<2x256xf32, #tpu.memory_space<vmem>>, vector<2x256xf32>
      %cst = arith.constant 3.125000e-02 : f32
      %13 = vector.broadcast %cst : f32 to vector<2x256xf32>
      %14 = arith.mulf %12, %13 : vector<2x256xf32>
      %15 = arith.truncf %14 : vector<2x256xf32> to vector<2x256xbf16>
      %c0_7 = arith.constant 0 : index
      %c0_8 = arith.constant 0 : index
      %16 = vector.load %arg11[%c0_7, %c0_8] : memref<2x256xbf16, #tpu.memory_space<vmem>>, vector<2x256xbf16>
      tpu.vector_store %arg11[%c0_7, %c0_8], %15 {strides = array<i32>} : memref<2x256xbf16, #tpu.memory_space<vmem>>, vector<2x256xbf16>,
    } else {
    }
    %c2_i32_4 = arith.constant 2 : i32
    %9 = arith.cmpi sge, %arg0, %c2_i32_4 : i32
    %10 = arith.extui %9 : i1 to i32
    %c0_i32_5 = arith.constant 0 : i32
    %11 = arith.cmpi ne, %10, %c0_i32_5 : i32
    scf.if %11 {
      %c0 = arith.constant 0 : index
      %c0_6 = arith.constant 0 : index
      %12 = vector.load %arg11[%c0, %c0_6] : memref<2x256xbf16, #tpu.memory_space<vmem>>, vector<2x256xbf16>
      %c0_7 = arith.constant 0 : index
      %c0_8 = arith.constant 0 : index
      %c0_9 = arith.constant 0 : index
      %13 = vector.load %arg2[%c0_7, %c0_8, %c0_9] : memref<1x256x128xbf16, #tpu.memory_space<vmem>>, vector<1x256x128xbf16>
      %14 = vector.shape_cast %13 : vector<1x256x128xbf16> to vector<256x128xbf16>
      %cst = arith.constant dense<0.000000e+00> : vector<2x128xf32>
      %15 = tpu.matmul %12, %14, %cst {dimension_numbers = #tpu.dot_dimension_numbers<[1], [0], [0], [1], [0, 0, 1, 1], [], []>} : vector<2x256xbf16>, vector<256x128xbf16>, vector<2x128xf32> -> vector<2x128xf32>
      %c0_10 = arith.constant 0 : index
      %c0_11 = arith.constant 0 : index
      %16 = vector.load %arg12[%c0_10, %c0_11] : memref<2x1024xf32, #tpu.memory_space<vmem>>, vector<2x1024xf32>
      %17 = arith.truncf %15 : vector<2x128xf32> to vector<2x128xbf16>
      %c0_12 = arith.constant 0 : index
      %c0_13 = arith.constant 0 : index
      %18 = vector.load %arg3[%c0_12, %c0_13] : memref<128x1024xbf16, #tpu.memory_space<vmem>>, vector<128x1024xbf16>
      %cst_14 = arith.constant dense<0.000000e+00> : vector<2x1024xf32>
      %19 = tpu.matmul %17, %18, %cst_14 {dimension_numbers = #tpu.dot_dimension_numbers<[1], [0], [0], [1], [0, 0, 1, 1], [], []>} : vector<2x128xbf16>, vector<128x1024xbf16>, vector<2x1024xf32> -> vector<2x1024xf32>
      %20 = arith.addf %16, %19 : vector<2x1024xf32>
      %c0_15 = arith.constant 0 : index
      %c0_16 = arith.constant 0 : index
      %21 = vector.load %arg12[%c0_15, %c0_16] : memref<2x1024xf32, #tpu.memory_space<vmem>>, vector<2x1024xf32>
      tpu.vector_store %arg12[%c0_15, %c0_16], %20 {strides = array<i32>} : memref<2x1024xf32, #tpu.memory_space<vmem>>, vector<2x1024xf32>,
      %c3_i32 = arith.constant 3 : i32
      %22 = arith.cmpi eq, %arg0, %c3_i32 : i32
      %23 = arith.extui %22 : i1 to i32
      %c0_i32_17 = arith.constant 0 : i32
      %24 = arith.cmpi ne, %23, %c0_i32_17 : i32
      scf.if %24 {
        %c0_18 = arith.constant 0 : index
        %c0_19 = arith.constant 0 : index
        %25 = vector.load %arg12[%c0_18, %c0_19] : memref<2x1024xf32, #tpu.memory_space<vmem>>, vector<2x1024xf32>
        %c0_20 = arith.constant 0 : index
        %c0_21 = arith.constant 0 : index
        %26 = vector.load %arg4[%c0_20, %c0_21] : memref<1x1024xf32, #tpu.memory_space<vmem>>, vector<1x1024xf32>
        %27 = vector.broadcast %26 : vector<1x1024xf32> to vector<2x1024xf32>
        %28 = arith.addf %25, %27 : vector<2x1024xf32>
        %cst_22 = arith.constant 0.000000e+00 : f32
        %29 = vector.broadcast %cst_22 : f32 to vector<2x1024xf32>
        %30 = arith.maximumf %28, %29 : vector<2x1024xf32>
        %31 = arith.truncf %30 : vector<2x1024xf32> to vector<2x1024xbf16>
        %c0_23 = arith.constant 0 : index
        %c0_24 = arith.constant 0 : index
        %32 = vector.load %arg5[%c0_23, %c0_24] : memref<1024x128xbf16, #tpu.memory_space<vmem>>, vector<1024x128xbf16>
        %cst_25 = arith.constant dense<0.000000e+00> : vector<2x128xf32>
        %33 = tpu.matmul %31, %32, %cst_25 {dimension_numbers = #tpu.dot_dimension_numbers<[1], [0], [0], [1], [0, 0, 1, 1], [], []>} : vector<2x1024xbf16>, vector<1024x128xbf16>, vector<2x128xf32> -> vector<2x128xf32>
        %c0_26 = arith.constant 0 : index
        %c0_27 = arith.constant 0 : index
        %34 = vector.load %arg6[%c0_26, %c0_27] : memref<1x128xf32, #tpu.memory_space<vmem>>, vector<1x128xf32>
        %35 = vector.broadcast %34 : vector<1x128xf32> to vector<2x128xf32>
        %36 = arith.addf %33, %35 : vector<2x128xf32>
        %cst_28 = arith.constant 0.000000e+00 : f32
        %37 = vector.broadcast %cst_28 : f32 to vector<2x128xf32>
        %38 = arith.maximumf %36, %37 : vector<2x128xf32>
        %c0_29 = arith.constant 0 : index
        %c0_30 = arith.constant 0 : index
        %39 = vector.load %arg7[%c0_29, %c0_30] : memref<128x1xf32, #tpu.memory_space<vmem>>, vector<128x1xf32>
        %cst_31 = arith.constant dense<0.000000e+00> : vector<2x1xf32>
        %40 = tpu.matmul %38, %39, %cst_31 {dimension_numbers = #tpu.dot_dimension_numbers<[1], [0], [0], [1], [0, 0, 1, 1], [], []>} : vector<2x128xf32>, vector<128x1xf32>, vector<2x1xf32> -> vector<2x1xf32>
        %c0_32 = arith.constant 0 : index
        %c0_33 = arith.constant 0 : index
        %41 = vector.load %arg8[%c0_32, %c0_33] : memref<1x1xf32, #tpu.memory_space<vmem>>, vector<1x1xf32>
        %42 = vector.broadcast %41 : vector<1x1xf32> to vector<2x1xf32>
        %43 = arith.addf %40, %42 : vector<2x1xf32>
        %cst_34 = arith.constant 0.000000e+00 : f32
        %44 = vector.broadcast %cst_34 : f32 to vector<2x1xf32>
        %45 = arith.maximumf %43, %44 : vector<2x1xf32>
        %c0_35 = arith.constant 0 : index
        %c0_36 = arith.constant 0 : index
        %46 = vector.load %arg9[%c0_35, %c0_36] : memref<2x1xf32, #tpu.memory_space<vmem>>, vector<2x1xf32>
        tpu.vector_store %arg9[%c0_35, %c0_36], %45 {strides = array<i32>} : memref<2x1xf32, #tpu.memory_space<vmem>>, vector<2x1xf32>,
      } else {
      }
    } else {
    }
    return
  }
  func.func @transform_0(%arg0: i32) -> (i32, i32, i32) {
    %c1_i32 = arith.constant 1 : i32
    %0 = arith.minsi %arg0, %c1_i32 : i32
    %c0_i32 = arith.constant 0 : i32
    %c0_i32_0 = arith.constant 0 : i32
    %c0_i32_1 = arith.constant 0 : i32
    return %c0_i32, %0, %c0_i32_0 : i32, i32, i32
  }
  func.func @transform_1(%arg0: i32) -> (i32, i32, i32) {
    %c2_i32 = arith.constant 2 : i32
    %0 = arith.subi %arg0, %c2_i32 : i32
    %c0_i32 = arith.constant 0 : i32
    %1 = arith.maxsi %0, %c0_i32 : i32
    %c0_i32_0 = arith.constant 0 : i32
    %c0_i32_1 = arith.constant 0 : i32
    %c0_i32_2 = arith.constant 0 : i32
    return %1, %c0_i32_0, %c0_i32_1 : i32, i32, i32
  }
  func.func @transform_2(%arg0: i32) -> (i32, i32) {
    %c2_i32 = arith.constant 2 : i32
    %0 = arith.subi %arg0, %c2_i32 : i32
    %c0_i32 = arith.constant 0 : i32
    %1 = arith.maxsi %0, %c0_i32 : i32
    %c0_i32_0 = arith.constant 0 : i32
    %c0_i32_1 = arith.constant 0 : i32
    return %1, %c0_i32_0 : i32, i32
  }
  func.func @transform_3(%arg0: i32) -> (i32, i32) {
    %c0_i32 = arith.constant 0 : i32
    %c0_i32_0 = arith.constant 0 : i32
    %c0_i32_1 = arith.constant 0 : i32
    return %c0_i32, %c0_i32_0 : i32, i32
  }
  func.func @transform_4(%arg0: i32) -> (i32, i32) {
    %c0_i32 = arith.constant 0 : i32
    %c0_i32_0 = arith.constant 0 : i32
    %c0_i32_1 = arith.constant 0 : i32
    return %c0_i32, %c0_i32_0 : i32, i32
  }
  func.func @transform_5(%arg0: i32) -> (i32, i32) {
    %c0_i32 = arith.constant 0 : i32
    %c0_i32_0 = arith.constant 0 : i32
    %c0_i32_1 = arith.constant 0 : i32
    return %c0_i32, %c0_i32_0 : i32, i32
  }
  func.func @transform_6(%arg0: i32) -> (i32, i32) {
    %c0_i32 = arith.constant 0 : i32
    %c0_i32_0 = arith.constant 0 : i32
    %c0_i32_1 = arith.constant 0 : i32
    return %c0_i32, %c0_i32_0 : i32, i32
  }
  func.func @transform_7(%arg0: i32) -> (i32, i32) {
    %c0_i32 = arith.constant 0 : i32
    %c0_i32_0 = arith.constant 0 : i32
    %c0_i32_1 = arith.constant 0 : i32
    return %c0_i32, %c0_i32_0 : i32, i32
  }
  func.func @transform_8(%arg0: i32) -> (i32, i32) {
    %c0_i32 = arith.constant 0 : i32
    %c0_i32_0 = arith.constant 0 : i32
    %c0_i32_1 = arith.constant 0 : i32
    return %c0_i32, %c0_i32_0 : i32, i32
  }
}

</mosaic_0001>

<llo_original>
// kernel: _forward.1
$region0: #{_forward.1}
  #allocation0 [shape = 'u32[]', space=smem, size = 0x4, offset = 0x4, fixed_abs, tag = 'smem constant byte address 0x4 - core index']
  #allocation1 [shape = 'u32[144,128]{1,0:T(1,128)}', space=vmem, size = 0x12000, scoped, tag = 'internal scratch']
  #allocation2 [shape = 'f32[2,256]{1,0:T(2,128)}', space=vmem, size = 0x800, scoped, tag = 'scratch operand']
  #allocation3 [shape = 'bf16[2,256]{1,0:T(2,128)(2,1)}', space=vmem, size = 0x400, scoped, tag = 'scratch operand']
  #allocation4 [shape = 'f32[2,1024]{1,0:T(2,128)}', space=vmem, size = 0x2000, scoped, tag = 'scratch operand']
  #allocation5 [shape = 'f32[1,1]{1,0:T(1,128)S(1)}', space=vmem, size = 0x200, scoped, tag = 'scoped memory for _forward.1']
  %s0 = inlined_call_operand.vmem [shape: bf16[2,32,256], index: 0, kind: input, shape index: {}]
  %s1 = inlined_call_operand.hbm [shape: bf16[2,256,128], index: 1, kind: input, shape index: {}]
  %s2 = inlined_call_operand.hbm [shape: bf16[256,1024], index: 2, kind: input, shape index: {}]
  %s3 = inlined_call_operand.vmem [shape: f32[1,1024], index: 3, kind: input, shape index: {}]
  %s4 = inlined_call_operand.hbm [shape: bf16[1024,128], index: 4, kind: input, shape index: {}]
  %s5 = inlined_call_operand.vmem [shape: f32[1,128], index: 5, kind: input, shape index: {}]
  %s6 = inlined_call_operand.vmem [shape: f32[128,1], index: 6, kind: input, shape index: {}]
  %s7 = inlined_call_operand.<no memory space> [shape: f32[1,1], index: 7, kind: input, shape index: {}]
  %s8 = inlined_call_operand.vmem [shape: f32[2,1], index: 8, kind: output, shape index: {}]
  %s9 = sld [smem:[#allocation0]]
  $region135: #{_forward.1} parent=0
    _
  %s11 = ssub.s32 1, %s9
  %s12 = scalar_select 0, %s11, %s9
  %v13 = vstv %s7
  %14 = vst [vmem:[#allocation5] sm:$0x1] %v13
  $region1: #{_forward.1} parent=0
    #allocation6 [shape = 'u8[32768]{0}', space=vmem, size = 0x8000, scoped, tag = 'input window, operand 0']
    #allocation7 [shape = 'u8[131072]{0}', space=vmem, size = 0x20000, scoped, tag = 'input window, operand 1']
    #allocation8 [shape = 's32[2]{0}', space=sflag, size = 0x8, scoped, tag = 'scoped memory for _forward.1']
    #allocation9 [shape = 'u8[524288]{0}', space=vmem, size = 0x80000, scoped, tag = 'input window, operand 2']
    #allocation10 [shape = 's32[2]{0}', space=sflag, size = 0x8, scoped, tag = 'scoped memory for _forward.1']
    #allocation11 [shape = 'u8[262144]{0}', space=vmem, size = 0x40000, scoped, tag = 'input window, operand 4, single buffered']
    %15 = vsyncpa [#allocation8], 0
    %s16 = scalar_lea.sflag [#allocation8], 1
    %17 = vsyncpa %s16, 0
    %18 = vsyncpa [#allocation10], 0
    %s19 = scalar_lea.sflag [#allocation10], 1
    %20 = vsyncpa %s19, 0
    loop: start=0, step=1, limit=6
    $region2: #{_forward.1} parent=1 // loop_pre_header
      _
    $region3: #{_forward.1} parent=1 // loop_header
      %s22 = sphi 0, %s26
      %p23 = scmp.ge.s32.totalorder %s22, 6
      %s36 = sphi 0, %s38
      %s39 = sphi 0, %s36
      %s40 = sphi 0, %s39
      %s56 = sphi 0, %s40
      %s68 = sphi 0, %s70
      %s71 = sphi 0, %s68
      %s72 = sphi 0, %s71
      %s88 = sphi 0, %s72
      %s100 = sphi 0, %s102
      %s103 = sphi 0, %s100
      %s104 = sphi 0, %s103
      %s120 = sphi 0, %s104
      %s124 = sphi 0, %s124
      %s126 = sphi 0, %s124
      %s127 = sphi 0, %s126
      %s141 = sphi 0, %s127
      %s145 = sphi 0, %s145
      %s147 = sphi 0, %s145
      %s148 = sphi 0, %s147
      %s162 = sphi 0, %s148
      %s166 = sphi 0, %s166
      %s168 = sphi 0, %s166
      %s169 = sphi 0, %s168
      %s183 = sphi 0, %s169
      %s187 = sphi 0, %s187
      %s189 = sphi 0, %s187
      %s190 = sphi 0, %s189
      %s204 = sphi 0, %s190
      %s208 = sphi 0, %s208
      %s210 = sphi 0, %s208
      %s211 = sphi 0, %s210
      %s225 = sphi 0, %s211
      %s229 = sphi 0, %s229
      %s231 = sphi 0, %s229
      %s232 = sphi 0, %s231
      %s246 = sphi 0, %s232
    $region4: #{_forward.1} parent=1 // loop_header_branch
      %25 = sbr.rel (%p23) target = $region8
    $region5: #{_forward.1} parent=1 // loop_body
      %s27 = ssub.s32 %s22, 1
      %s28 = ssub.s32 %s22, 2
      %s29 = sadd.s32 %s22, 1
      %p30 = scmp.lt.s32.totalorder %s22, 1
      %s31 = scalar_select %p30, %s22, 1
      %p32 = scmp.lt.s32.totalorder %s29, 1
      %s33 = scalar_select %p32, %s29, 1
      %s34 = ssub.s32 %s31, %s33
      %p35 = scmp.eq.s32.totalorder %s34, 0
      %s37 = sadd.s32 %s36, 1
      %s38 = scalar_select %p35, %s36, %s37
      %p41 = pneg %p35
      %p42 = scmp.eq.s32.totalorder %s22, 3
      %p43 = por %p41, %p42
      %p44 = scmp.ne.s32.totalorder %s36, %s39
      %p45 = scmp.eq.s32.totalorder %s22, 0
      %p46 = por %p44, %p45
      %p47 = scmp.ne.s32.totalorder %s36, %s39
      %p48 = scmp.eq.s32.totalorder %s27, 3
      %p49 = por %p47, %p48
      %p50 = scmp.ne.s32.totalorder %s39, %s40
      %p51 = scmp.eq.s32.totalorder %s27, 0
      %p52 = por %p50, %p51
      %p53 = scmp.ne.s32.totalorder %s39, %s40
      %p54 = scmp.eq.s32.totalorder %s28, 3
      %p55 = por %p53, %p54
      %p57 = scmp.ne.s32.totalorder %s40, %s56
      %p58 = scmp.eq.s32.totalorder %s28, 0
      %p59 = por %p57, %p58
      %s60 = ssub.s32 %s22, 2
      %p61 = scmp.gt.s32.totalorder %s60, 0
      %s62 = scalar_select %p61, %s60, 0
      %s63 = ssub.s32 %s29, 2
      %p64 = scmp.gt.s32.totalorder %s63, 0
      %s65 = scalar_select %p64, %s63, 0
      %s66 = ssub.s32 %s62, %s65
      %p67 = scmp.eq.s32.totalorder %s66, 0
      %s69 = sadd.s32 %s68, 1
      %s70 = scalar_select %p67, %s68, %s69
      %p73 = pneg %p67
      %p74 = scmp.eq.s32.totalorder %s22, 3
      %p75 = por %p73, %p74
      %p76 = scmp.ne.s32.totalorder %s68, %s71
      %p77 = scmp.eq.s32.totalorder %s22, 0
      %p78 = por %p76, %p77
      %p79 = scmp.ne.s32.totalorder %s68, %s71
      %p80 = scmp.eq.s32.totalorder %s27, 3
      %p81 = por %p79, %p80
      %p82 = scmp.ne.s32.totalorder %s71, %s72
      %p83 = scmp.eq.s32.totalorder %s27, 0
      %p84 = por %p82, %p83
      %p85 = scmp.ne.s32.totalorder %s71, %s72
      %p86 = scmp.eq.s32.totalorder %s28, 3
      %p87 = por %p85, %p86
      %p89 = scmp.ne.s32.totalorder %s72, %s88
      %p90 = scmp.eq.s32.totalorder %s28, 0
      %p91 = por %p89, %p90
      %s92 = ssub.s32 %s22, 2
      %p93 = scmp.gt.s32.totalorder %s92, 0
      %s94 = scalar_select %p93, %s92, 0
      %s95 = ssub.s32 %s29, 2
      %p96 = scmp.gt.s32.totalorder %s95, 0
      %s97 = scalar_select %p96, %s95, 0
      %s98 = ssub.s32 %s94, %s97
      %p99 = scmp.eq.s32.totalorder %s98, 0
      %s101 = sadd.s32 %s100, 1
      %s102 = scalar_select %p99, %s100, %s101
      %p105 = pneg %p99
      %p106 = scmp.eq.s32.totalorder %s22, 3
      %p107 = por %p105, %p106
      %p108 = scmp.ne.s32.totalorder %s100, %s103
      %p109 = scmp.eq.s32.totalorder %s22, 0
      %p110 = por %p108, %p109
      %p111 = scmp.ne.s32.totalorder %s100, %s103
      %p112 = scmp.eq.s32.totalorder %s27, 3
      %p113 = por %p111, %p112
      %p114 = scmp.ne.s32.totalorder %s103, %s104
      %p115 = scmp.eq.s32.totalorder %s27, 0
      %p116 = por %p114, %p115
      %p117 = scmp.ne.s32.totalorder %s103, %s104
      %p118 = scmp.eq.s32.totalorder %s28, 3
      %p119 = por %p117, %p118
      %p121 = scmp.ne.s32.totalorder %s104, %s120
      %p122 = scmp.eq.s32.totalorder %s28, 0
      %p123 = por %p121, %p122
      %s125 = sadd.s32 %s124, 1
      %p128 = scmp.eq.s32.totalorder %s22, 3
      %p129 = scmp.ne.s32.totalorder %s124, %s126
      %p130 = scmp.eq.s32.totalorder %s22, 0
      %p131 = por %p129, %p130
      %p132 = scmp.ne.s32.totalorder %s124, %s126
      %p133 = scmp.eq.s32.totalorder %s27, 3
      %p134 = por %p132, %p133
      %p135 = scmp.ne.s32.totalorder %s126, %s127
      %p136 = scmp.eq.s32.totalorder %s27, 0
      %p137 = por %p135, %p136
      %p138 = scmp.ne.s32.totalorder %s126, %s127
      %p139 = scmp.eq.s32.totalorder %s28, 3
      %p140 = por %p138, %p139
      %p142 = scmp.ne.s32.totalorder %s127, %s141
      %p143 = scmp.eq.s32.totalorder %s28, 0
      %p144 = por %p142, %p143
      %s146 = sadd.s32 %s145, 1
      %p149 = scmp.eq.s32.totalorder %s22, 3
      %p150 = scmp.ne.s32.totalorder %s145, %s147
      %p151 = scmp.eq.s32.totalorder %s22, 0
      %p152 = por %p150, %p151
      %p153 = scmp.ne.s32.totalorder %s145, %s147
      %p154 = scmp.eq.s32.totalorder %s27, 3
      %p155 = por %p153, %p154
      %p156 = scmp.ne.s32.totalorder %s147, %s148
      %p157 = scmp.eq.s32.totalorder %s27, 0
      %p158 = por %p156, %p157
      %p159 = scmp.ne.s32.totalorder %s147, %s148
      %p160 = scmp.eq.s32.totalorder %s28, 3
      %p161 = por %p159, %p160
      %p163 = scmp.ne.s32.totalorder %s148, %s162
      %p164 = scmp.eq.s32.totalorder %s28, 0
      %p165 = por %p163, %p164
      %s167 = sadd.s32 %s166, 1
      %p170 = scmp.eq.s32.totalorder %s22, 3
      %p171 = scmp.ne.s32.totalorder %s166, %s168
      %p172 = scmp.eq.s32.totalorder %s22, 0
      %p173 = por %p171, %p172
      %p174 = scmp.ne.s32.totalorder %s166, %s168
      %p175 = scmp.eq.s32.totalorder %s27, 3
      %p176 = por %p174, %p175
      %p177 = scmp.ne.s32.totalorder %s168, %s169
      %p178 = scmp.eq.s32.totalorder %s27, 0
      %p179 = por %p177, %p178
      %p180 = scmp.ne.s32.totalorder %s168, %s169
      %p181 = scmp.eq.s32.totalorder %s28, 3
      %p182 = por %p180, %p181
      %p184 = scmp.ne.s32.totalorder %s169, %s183
      %p185 = scmp.eq.s32.totalorder %s28, 0
      %p186 = por %p184, %p185
      %s188 = sadd.s32 %s187, 1
      %p191 = scmp.eq.s32.totalorder %s22, 3
      %p192 = scmp.ne.s32.totalorder %s187, %s189
      %p193 = scmp.eq.s32.totalorder %s22, 0
      %p194 = por %p192, %p193
      %p195 = scmp.ne.s32.totalorder %s187, %s189
      %p196 = scmp.eq.s32.totalorder %s27, 3
      %p197 = por %p195, %p196
      %p198 = scmp.ne.s32.totalorder %s189, %s190
      %p199 = scmp.eq.s32.totalorder %s27, 0
      %p200 = por %p198, %p199
      %p201 = scmp.ne.s32.totalorder %s189, %s190
      %p202 = scmp.eq.s32.totalorder %s28, 3
      %p203 = por %p201, %p202
      %p205 = scmp.ne.s32.totalorder %s190, %s204
      %p206 = scmp.eq.s32.totalorder %s28, 0
      %p207 = por %p205, %p206
      %s209 = sadd.s32 %s208, 1
      %p212 = scmp.eq.s32.totalorder %s22, 3
      %p213 = scmp.ne.s32.totalorder %s208, %s210
      %p214 = scmp.eq.s32.totalorder %s22, 0
      %p215 = por %p213, %p214
      %p216 = scmp.ne.s32.totalorder %s208, %s210
      %p217 = scmp.eq.s32.totalorder %s27, 3
      %p218 = por %p216, %p217
      %p219 = scmp.ne.s32.totalorder %s210, %s211
      %p220 = scmp.eq.s32.totalorder %s27, 0
      %p221 = por %p219, %p220
      %p222 = scmp.ne.s32.totalorder %s210, %s211
      %p223 = scmp.eq.s32.totalorder %s28, 3
      %p224 = por %p222, %p223
      %p226 = scmp.ne.s32.totalorder %s211, %s225
      %p227 = scmp.eq.s32.totalorder %s28, 0
      %p228 = por %p226, %p227
      %s230 = sadd.s32 %s229, 1
      %p233 = scmp.eq.s32.totalorder %s22, 3
      %p234 = scmp.ne.s32.totalorder %s229, %s231
      %p235 = scmp.eq.s32.totalorder %s22, 0
      %p236 = por %p234, %p235
      %p237 = scmp.ne.s32.totalorder %s229, %s231
      %p238 = scmp.eq.s32.totalorder %s27, 3
      %p239 = por %p237, %p238
      %p240 = scmp.ne.s32.totalorder %s231, %s232
      %p241 = scmp.eq.s32.totalorder %s27, 0
      %p242 = por %p240, %p241
      %p243 = scmp.ne.s32.totalorder %s231, %s232
      %p244 = scmp.eq.s32.totalorder %s28, 3
      %p245 = por %p243, %p244
      %p247 = scmp.ne.s32.totalorder %s232, %s246
      %p248 = scmp.eq.s32.totalorder %s28, 0
      %p249 = por %p247, %p248
      %p250 = scmp.le.s32.totalorder 1, %s22
      %p251 = scmp.lt.s32.totalorder %s22, 5
      %p252 = pnand %p250, %p251
      %p253 = pneg %p252
      // Predicated region
      $region9: #{_forward.1} parent=5 // pred_check
        _
      $region10: #{_forward.1} parent=5 // pred_check_branch
        %255 = sbr.rel (%p252) target = $region12
      $region11: #{_forward.1} parent=5 // pred_region
        %s256 = ssub.s32 %s22, 1
        // Predicated region
        $region13: #{_forward.1} parent=11 // pred_check
          %p257 = pneg %p137
        $region14: #{_forward.1} parent=11 // pred_check_branch
          %259 = sbr.rel (%p257) target = $region16
        $region15: #{_forward.1} parent=11 // pred_region
          _
        $region16: #{_forward.1} parent=11 // pred_fallthru
          _
        // Predicated region
        $region17: #{_forward.1} parent=11 // pred_check
          %p260 = pneg %p158
        $region18: #{_forward.1} parent=11 // pred_check_branch
          %262 = sbr.rel (%p260) target = $region20
        $region19: #{_forward.1} parent=11 // pred_region
          %s264 = ssub.s32 8192, 8192
          %265 = vsyncadd [#allocation10], %s264
          %s266 = sshll.u32 [#allocation11], 4
          %s267 = int_to_ptr.vmem [resolvable:$true] %s266
          %272 = dma.hbm_to_vmem [thread:$0]  %s4, 8192, %s267, [#allocation10], 64, 64, 4
        $region20: #{_forward.1} parent=11 // pred_fallthru
          _
        // Predicated region
        $region21: #{_forward.1} parent=11 // pred_check
          %p273 = pneg %p179
        $region22: #{_forward.1} parent=11 // pred_check_branch
          %275 = sbr.rel (%p273) target = $region24
        $region23: #{_forward.1} parent=11 // pred_region
          _
        $region24: #{_forward.1} parent=11 // pred_fallthru
          _
        // Predicated region
        $region25: #{_forward.1} parent=11 // pred_check
          %p276 = pneg %p200
        $region26: #{_forward.1} parent=11 // pred_check_branch
          %278 = sbr.rel (%p276) target = $region28
        $region27: #{_forward.1} parent=11 // pred_region
          _
        $region28: #{_forward.1} parent=11 // pred_fallthru
          _
        // Predicated region
        $region29: #{_forward.1} parent=11 // pred_check
          %p279 = pneg %p221
        $region30: #{_forward.1} parent=11 // pred_check_branch
          %281 = sbr.rel (%p279) target = $region32
        $region31: #{_forward.1} parent=11 // pred_region
          _
        $region32: #{_forward.1} parent=11 // pred_fallthru
          _
      $region12: #{_forward.1} parent=5 // pred_fallthru
        _
      %p282 = scmp.lt.s32.totalorder %s22, 4
      // Predicated region
      $region33: #{_forward.1} parent=5 // pred_check
        %p283 = pneg %p282
      $region34: #{_forward.1} parent=5 // pred_check_branch
        %285 = sbr.rel (%p283) target = $region36
      $region35: #{_forward.1} parent=5 // pred_region
        // Predicated region
        $region37: #{_forward.1} parent=35 // pred_check
          %p286 = pneg %p46
        $region38: #{_forward.1} parent=35 // pred_check_branch
          %288 = sbr.rel (%p286) target = $region40
        $region39: #{_forward.1} parent=35 // pred_region
          %s289 = sand.u32 %s36, 1
          %s290 = sand.u32 %s36, 1
          %s291 = smul.addr %s290, 32
          %s292 = scalar_lea.vmem [#allocation6], %s291
          %p293 = scmp.lt.s32.totalorder %s22, 1
          %s294 = scalar_select %p293, %s22, 1
          %s295 = smul.u32 2, %s294
          %s296 = smul.addr %s295, 2
          %s297 = smul.addr %s296, 4
          %s298 = scalar_lea.vmem %s0, %s297
          // Predicated region
          $region41: #{_forward.1} parent=39 // pred_check
            _
          $region42: #{_forward.1} parent=39 // pred_check_branch
            %300 = sbr.rel (0) target = $region44
          $region43: #{_forward.1} parent=39 // pred_region
            // Predicated region
            $region45: #{_forward.1} parent=43 // pred_check
              _
            $region46: #{_forward.1} parent=43 // pred_check_branch
              %302 = sbr.rel (0) target = $region48
            $region47: #{_forward.1} parent=43 // pred_region
              // Predicated region
              $region60: #{_forward.1} parent=47 // pred_check
                _
              $region61: #{_forward.1} parent=47 // pred_check_branch
                %324 = sbr.rel (0) target = $region63
              $region62: #{_forward.1} parent=47 // pred_region
                loop: start=0, step=1, limit=1
                $region64: #{_forward.1} parent=62 // loop_pre_header
                  _
                $region65: #{_forward.1} parent=62 // loop_header
                  %s326 = sphi 0, %s330
                  %p327 = scmp.ge.s32.totalorder %s326, 1
                  %s331 = sphi %s298, %s298
                  %s332 = sphi %s292, %s292
                $region66: #{_forward.1} parent=62 // loop_header_branch
                  %329 = sbr.rel (%p327) target = $region70
                $region67: #{_forward.1} parent=62 // loop_body
                  %v333 = vld [vmem:[%s331] sm:$0xff]
                  %334 = vst [vmem:[%s332] sm:$0xff] %v333
                  %v335 = vld [vmem:[%s331 + $0x8] sm:$0xff]
                  %336 = vst [vmem:[%s332 + $0x8] sm:$0xff] %v335
                  %v337 = vld [vmem:[%s331 + $0x20] sm:$0xff]
                  %338 = vst [vmem:[%s332 + $0x10] sm:$0xff] %v337
                  %v339 = vld [vmem:[%s331 + $0x28] sm:$0xff]
                  %340 = vst [vmem:[%s332 + $0x18] sm:$0xff] %v339
                $region68: #{_forward.1} parent=62 // loop_footer
                  %s330 = sadd.s32 1, %s326
                $region69: #{_forward.1} parent=62 // loop_footer_branch
                  %325 = sbr.rel target = $region65
                $region70: #{_forward.1} parent=62 // loop_exit
                  _
              $region63: #{_forward.1} parent=47 // pred_fallthru
                _
              // Predicated region
              $region71: #{_forward.1} parent=47 // pred_check
                _
              $region72: #{_forward.1} parent=47 // pred_check_branch
                %342 = sbr.rel target = $region74
              $region73: #{_forward.1} parent=47 // pred_region
                _
              $region74: #{_forward.1} parent=47 // pred_fallthru
                _
            $region48: #{_forward.1} parent=43 // pred_fallthru
              _
            // Predicated region
            $region49: #{_forward.1} parent=43 // pred_check
              _
            $region50: #{_forward.1} parent=43 // pred_check_branch
              %304 = sbr.rel target = $region52
            $region51: #{_forward.1} parent=43 // pred_region
              %s306 = ssub.s32 256, 1
              loop: start=0, step=1, limit=1
              $region53: #{_forward.1} parent=51 // loop_pre_header
                _
              $region54: #{_forward.1} parent=51 // loop_header
                %s308 = sphi 0, %s312
                %p309 = scmp.ge.s32.totalorder %s308, 1
                %s313 = sphi %s298, %s298
                %s314 = sphi %s292, %s292
              $region55: #{_forward.1} parent=51 // loop_header_branch
                %311 = sbr.rel (%p309) target = $region59
              $region56: #{_forward.1} parent=51 // loop_body
                %v315 = vld [vmem:[%s313] sm:%s306]
                %316 = vst [vmem:[%s314] sm:%s306] %v315
                %v317 = vld [vmem:[%s313 + $0x8] sm:%s306]
                %318 = vst [vmem:[%s314 + $0x8] sm:%s306] %v317
                %v319 = vld [vmem:[%s313 + $0x20] sm:%s306]
                %320 = vst [vmem:[%s314 + $0x10] sm:%s306] %v319
                %v321 = vld [vmem:[%s313 + $0x28] sm:%s306]
                %322 = vst [vmem:[%s314 + $0x18] sm:%s306] %v321
              $region57: #{_forward.1} parent=51 // loop_footer
                %s312 = sadd.s32 1, %s308
              $region58: #{_forward.1} parent=51 // loop_footer_branch
                %307 = sbr.rel target = $region54
              $region59: #{_forward.1} parent=51 // loop_exit
                _
            $region52: #{_forward.1} parent=43 // pred_fallthru
              _
          $region44: #{_forward.1} parent=39 // pred_fallthru
            _
          %343 = vnop
        $region40: #{_forward.1} parent=35 // pred_fallthru
          _
        // Predicated region
        $region75: #{_forward.1} parent=35 // pred_check
          %p344 = pneg %p78
        $region76: #{_forward.1} parent=35 // pred_check_branch
          %346 = sbr.rel (%p344) target = $region78
        $region77: #{_forward.1} parent=35 // pred_region
          %s347 = sand.u32 %s68, 1
          %s348 = scalar_lea.sflag [#allocation8], %s347
          %s349 = sand.u32 %s68, 1
          %s350 = smul.addr %s349, 128
          %s351 = scalar_lea.vmem [#allocation7], %s350
          %s352 = ssub.s32 %s22, 2
          %p353 = scmp.gt.s32.totalorder %s352, 0
          %s354 = scalar_select %p353, %s352, 0
          %s356 = ssub.s32 2048, 2048
          %357 = vsyncadd %s348, %s356
          %s358 = smul.addr %s354, 32
          %s359 = smul.addr %s358, 64
          %s360 = scalar_lea.hbm %s1, %s359
          %s361 = sshll.u32 %s351, 4
          %s362 = int_to_ptr.vmem [resolvable:$true] %s361
          %367 = dma.hbm_to_vmem [thread:$0]  %s360, 2048, %s362, %s348, 64, 64, 4
        $region78: #{_forward.1} parent=35 // pred_fallthru
          _
        // Predicated region
        $region79: #{_forward.1} parent=35 // pred_check
          %p368 = pneg %p110
        $region80: #{_forward.1} parent=35 // pred_check_branch
          %370 = sbr.rel (%p368) target = $region82
        $region81: #{_forward.1} parent=35 // pred_region
          %s371 = sand.u32 %s22, 1
          %s372 = scalar_lea.sflag [#allocation10], %s371
          %s373 = sand.u32 %s100, 1
          %s374 = smul.addr %s373, 512
          %s375 = scalar_lea.vmem [#allocation9], %s374
          %s376 = ssub.s32 %s22, 2
          %p377 = scmp.gt.s32.totalorder %s376, 0
          %s378 = scalar_select %p377, %s376, 0
          %s379 = smul.u32 16, %s378
          %s381 = ssub.s32 8192, 8192
          %382 = vsyncadd %s372, %s381
          %s383 = smul.addr %s379, 8
          %s384 = smul.addr %s383, 64
          %s385 = scalar_lea.hbm %s2, %s384
          %s386 = sshll.u32 %s375, 4
          %s387 = int_to_ptr.vmem [resolvable:$true] %s386
          %392 = dma.hbm_to_vmem [thread:$0]  %s385, 8192, %s387, %s372, 512, 512, 32
        $region82: #{_forward.1} parent=35 // pred_fallthru
          _
      $region36: #{_forward.1} parent=5 // pred_fallthru
        _
      %p393 = scmp.le.s32.totalorder 1, %s22
      %p394 = scmp.lt.s32.totalorder %s22, 5
      %p395 = pnand %p393, %p394
      %p396 = pneg %p395
      // Predicated region
      $region83: #{_forward.1} parent=5 // pred_check
        _
      $region84: #{_forward.1} parent=5 // pred_check_branch
        %398 = sbr.rel (%p395) target = $region86
      $region85: #{_forward.1} parent=5 // pred_region
        %s399 = ssub.s32 %s22, 1
        %s400 = sand.u32 %s39, 1
        %s401 = sand.u32 %s39, 1
        %s402 = smul.addr %s401, 32
        %s403 = scalar_lea.vmem [#allocation6], %s402
        // Predicated region
        $region87: #{_forward.1} parent=85 // pred_check
          %p404 = pneg %p52
        $region88: #{_forward.1} parent=85 // pred_check_branch
          %406 = sbr.rel (%p404) target = $region90
        $region89: #{_forward.1} parent=85 // pred_region
          _
        $region90: #{_forward.1} parent=85 // pred_fallthru
          _
        %s407 = sand.u32 %s71, 1
        %s408 = scalar_lea.sflag [#allocation8], %s407
        %s409 = sand.u32 %s71, 1
        %s410 = smul.addr %s409, 128
        %s411 = scalar_lea.vmem [#allocation7], %s410
        // Predicated region
        $region91: #{_forward.1} parent=85 // pred_check
          %p412 = pneg %p84
        $region92: #{_forward.1} parent=85 // pred_check_branch
          %414 = sbr.rel (%p412) target = $region94
        $region93: #{_forward.1} parent=85 // pred_region
          %415 = dma.done %s408, 2048
        $region94: #{_forward.1} parent=85 // pred_fallthru
          _
        %s416 = sand.u32 %s27, 1
        %s417 = scalar_lea.sflag [#allocation10], %s416
        %s418 = sand.u32 %s103, 1
        %s419 = smul.addr %s418, 512
        %s420 = scalar_lea.vmem [#allocation9], %s419
        // Predicated region
        $region95: #{_forward.1} parent=85 // pred_check
          %p421 = pneg %p116
        $region96: #{_forward.1} parent=85 // pred_check_branch
          %423 = sbr.rel (%p421) target = $region98
        $region97: #{_forward.1} parent=85 // pred_region
          %424 = dma.done %s417, 8192
        $region98: #{_forward.1} parent=85 // pred_fallthru
          _
        // Predicated region
        $region99: #{_forward.1} parent=85 // pred_check
          %p425 = pneg %p158
        $region100: #{_forward.1} parent=85 // pred_check_branch
          %427 = sbr.rel (%p425) target = $region102
        $region101: #{_forward.1} parent=85 // pred_region
          %428 = dma.done [#allocation10], 8192
        $region102: #{_forward.1} parent=85 // pred_fallthru
          _
        %s429 = sand.u32 %s39, 1
        %s430 = sand.u32 %s39, 1
        %s431 = smul.addr %s430, 32
        %s432 = scalar_lea.vmem [#allocation6], %s431
        %p433 = pneg %p52
        %p434 = pneg %p49
        %s435 = sand.u32 %s71, 1
        %s436 = scalar_lea.sflag [#allocation8], %s435
        %s437 = sand.u32 %s71, 1
        %s438 = smul.addr %s437, 128
        %s439 = scalar_lea.vmem [#allocation7], %s438
        %p440 = pneg %p84
        %p441 = pneg %p81
        %s442 = sand.u32 %s27, 1
        %s443 = scalar_lea.sflag [#allocation10], %s442
        %s444 = sand.u32 %s103, 1
        %s445 = smul.addr %s444, 512
        %s446 = scalar_lea.vmem [#allocation9], %s445
        %p447 = pneg %p116
        %p448 = pneg %p113
        %p449 = pneg %p137
        %p450 = pneg %p134
        %p451 = pneg %p158
        %p452 = pneg %p155
        %p453 = pneg %p179
        %p454 = pneg %p176
        %p455 = pneg %p200
        %p456 = pneg %p197
        %p457 = pneg %p221
        %p458 = pneg %p218
        %p459 = pneg %p242
        %p460 = pneg %p239
        %p461 = scmp.lt.s32.totalorder %s27, 1
        %s462 = scalar_select %p461, %s27, 1
        %s463 = smul.u32 2, %s462
        %s464 = ssub.s32 %s27, 2
        %p465 = scmp.gt.s32.totalorder %s464, 0
        %s466 = scalar_select %p465, %s464, 0
        %s467 = ssub.s32 %s27, 2
        %p468 = scmp.gt.s32.totalorder %s467, 0
        %s469 = scalar_select %p468, %s467, 0
        %s470 = smul.u32 16, %s469
        %p472 = scmp.eq.s32.totalorder %s27, 0
        // Predicated region
        $region103: #{_forward.1} parent=85 // pred_check
          %p473 = pneg %p472
        $region104: #{_forward.1} parent=85 // pred_check_branch
          %475 = sbr.rel (%p473) target = $region106
        $region105: #{_forward.1} parent=85 // pred_region
          %476 = vst [vmem:[#allocation2] sm:$0xf] 0.0
          %477 = vst [vmem:[#allocation4] sm:$0xff] 0.0
          %478 = vst [vmem:[#allocation4 + $0x8] sm:$0xff] 0.0
        $region106: #{_forward.1} parent=85 // pred_fallthru
          _
        %p479 = scmp.lt.s32.totalorder %s27, 2
        // Predicated region
        $region107: #{_forward.1} parent=85 // pred_check
          %p480 = pneg %p479
        $region108: #{_forward.1} parent=85 // pred_check_branch
          %482 = sbr.rel (%p480) target = $region110
        $region109: #{_forward.1} parent=85 // pred_region
          %v483 = vld [vmem:[%s403] sm:$0xff]
          %v484 = vld [vmem:[%s403 + $0x8] sm:$0xff]
          %v485 = vld [vmem:[%s403 + $0x10] sm:$0xff]
          %v486 = vld [vmem:[%s403 + $0x18] sm:$0xff]
          %v487 = vld [vmem:[#allocation2] sm:$0xf]
          %v488 = vunpack.c.l.bf16 %v483
          %v489 = vunpack.c.h.bf16 %v483
          %v490 = vunpack.c.l.bf16 %v484
          %v491 = vunpack.c.h.bf16 %v484
          %v492 = vunpack.c.l.bf16 %v485
          %v493 = vunpack.c.h.bf16 %v485
          %v494 = vunpack.c.l.bf16 %v486
          %v495 = vunpack.c.h.bf16 %v486
          %v496 = vadd.f32 %v488, %v490
          %v497 = vrot.slane %v496, 4
          %v498 = vadd.f32 %v496, %v497
          %v499 = vrot.slane %v498, 2
          %v500 = vadd.f32 %v498, %v499
          %v501 = vrot.slane %v500, 1
          %v502 = vadd.f32 %v500, %v501
          %v503 = vadd.f32 %v489, %v491
          %v504 = vrot.slane %v503, 4
          %v505 = vadd.f32 %v503, %v504
          %v506 = vrot.slane %v505, 2
          %v507 = vadd.f32 %v505, %v506
          %v508 = vrot.slane %v507, 1
          %v509 = vadd.f32 %v507, %v508
          %v510 = vadd.f32 %v492, %v494
          %v511 = vrot.slane %v510, 4
          %v512 = vadd.f32 %v510, %v511
          %v513 = vrot.slane %v512, 2
          %v514 = vadd.f32 %v512, %v513
          %v515 = vrot.slane %v514, 1
          %v516 = vadd.f32 %v514, %v515
          %v517 = vadd.f32 %v493, %v495
          %v518 = vrot.slane %v517, 4
          %v519 = vadd.f32 %v517, %v518
          %v520 = vrot.slane %v519, 2
          %v521 = vadd.f32 %v519, %v520
          %v522 = vrot.slane %v521, 1
          %v523 = vadd.f32 %v521, %v522
          %v528 = vcombine.low %v502, %v509
          %v530 = vunpack.c.l.s4 1983009808
          %v531 = vunpack.c.0.s8 %v530
          %v532 = vlaneseq
          %v533 = vshrl.u32 %v532, 7
          %v534 = vsub.s32 %v531, %v533
          %v535 = vrot.slane %v528, %v534
          %v536 = vcombine.low %v516, %v523
          %v538 = vunpack.c.l.s4 1983009808
          %v539 = vunpack.c.0.s8 %v538
          %v540 = vlaneseq
          %v541 = vshrl.u32 %v540, 7
          %v542 = vsub.s32 %v539, %v541
          %v543 = vrot.slane %v536, %v542
          %vm544 = vcmask 1044484
          %v545 = vsel %vm544, %v535, %v535
          %vm546 = vcmask 1046534
          %v547 = vsel %vm546, %v535, %v545
          %v548 = vrot.slane %v543, 7
          %vm549 = vcmask 1041409
          %v550 = vsel %vm549, %v548, %v547
          %vm551 = vcmask 1043459
          %v552 = vsel %vm551, %v548, %v550
          %vm553 = vcmask 1045509
          %v554 = vsel %vm553, %v548, %v552
          %vm555 = vcmask 1047559
          %v556 = vsel %vm555, %v548, %v554
          %v558 = vadd.f32 %v487, %v556
          %559 = vst [vmem:[#allocation2] sm:$0xf] %v558
        $region110: #{_forward.1} parent=85 // pred_fallthru
          _
        %p560 = scmp.eq.s32.totalorder %s27, 2
        // Predicated region
        $region111: #{_forward.1} parent=85 // pred_check
          %p561 = pneg %p560
        $region112: #{_forward.1} parent=85 // pred_check_branch
          %563 = sbr.rel (%p561) target = $region114
        $region113: #{_forward.1} parent=85 // pred_region
          %v564 = vld [vmem:[#allocation2] sm:$0xf]
          %v565 = vmul.f32 %v564, 0.03125
          %v568 = vunpack.c.l.s4 1983009808
          %v569 = vunpack.c.0.s8 %v568
          %v570 = vlaneseq
          %v571 = vshrl.u32 %v570, 7
          %v572 = vsub.s32 %v569, %v571
          %v573 = vrot.slane %v565, %v572
          %v574 = vcombine.high %v573, %v573
          %v577 = vpack.c.bf16 %v573, %v573
          %v578 = vpack.c.bf16 %v574, %v574
          %v581 = vcombine.low %v577, %v578
          %v583 = vunpack.c.l.s4 1966171168
          %v584 = vunpack.c.0.s8 %v583
          %v585 = vlaneseq
          %v586 = vshrl.u32 %v585, 7
          %v587 = vsub.s32 %v584, %v586
          %v588 = vrot.slane %v581, %v587
          %v590 = vunpack.c.l.s4 1966171168
          %v591 = vunpack.c.0.s8 %v590
          %v592 = vlaneseq
          %v593 = vshrl.u32 %v592, 7
          %v594 = vsub.s32 %v591, %v593
          %v595 = vrot.slane %v588, %v594
          %597 = vst [vmem:[#allocation3] sm:$0x3] %v595
        $region114: #{_forward.1} parent=85 // pred_fallthru
          _
        %p598 = scmp.ge.s32.totalorder %s27, 2
        // Predicated region
        $region115: #{_forward.1} parent=85 // pred_check
          %p599 = pneg %p598
        $region116: #{_forward.1} parent=85 // pred_check_branch
          %601 = sbr.rel (%p599) target = $region118
        $region117: #{_forward.1} parent=85 // pred_region
          %v602 = vld [vmem:[#allocation3] sm:$0x3]
          %v603 = vld [vmem:[%s411] sm:$0xf]
          %v604 = vld [vmem:[%s411 + $0x4] sm:$0xf]
          %v605 = vld [vmem:[%s411 + $0x8] sm:$0xf]
          %v606 = vld [vmem:[%s411 + $0xc] sm:$0xf]
          %v607 = vld [vmem:[%s411 + $0x10] sm:$0xf]
          %v608 = vld [vmem:[%s411 + $0x14] sm:$0xf]
          %v609 = vld [vmem:[%s411 + $0x18] sm:$0xf]
          %v610 = vld [vmem:[%s411 + $0x1c] sm:$0xf]
          %v611 = vld [vmem:[%s411 + $0x20] sm:$0xf]
          %v612 = vld [vmem:[%s411 + $0x24] sm:$0xf]
          %v613 = vld [vmem:[%s411 + $0x28] sm:$0xf]
          %v614 = vld [vmem:[%s411 + $0x2c] sm:$0xf]
          %v615 = vld [vmem:[%s411 + $0x30] sm:$0xf]
          %v616 = vld [vmem:[%s411 + $0x34] sm:$0xf]
          %v617 = vld [vmem:[%s411 + $0x38] sm:$0xf]
          %v618 = vld [vmem:[%s411 + $0x3c] sm:$0xf]
          %v619 = vld [vmem:[%s411 + $0x40] sm:$0xf]
          %v620 = vld [vmem:[%s411 + $0x44] sm:$0xf]
          %v621 = vld [vmem:[%s411 + $0x48] sm:$0xf]
          %v622 = vld [vmem:[%s411 + $0x4c] sm:$0xf]
          %v623 = vld [vmem:[%s411 + $0x50] sm:$0xf]
          %v624 = vld [vmem:[%s411 + $0x54] sm:$0xf]
          %v625 = vld [vmem:[%s411 + $0x58] sm:$0xf]
          %v626 = vld [vmem:[%s411 + $0x5c] sm:$0xf]
          %v627 = vld [vmem:[%s411 + $0x60] sm:$0xf]
          %v628 = vld [vmem:[%s411 + $0x64] sm:$0xf]
          %v629 = vld [vmem:[%s411 + $0x68] sm:$0xf]
          %v630 = vld [vmem:[%s411 + $0x6c] sm:$0xf]
          %v631 = vld [vmem:[%s411 + $0x70] sm:$0xf]
          %v632 = vld [vmem:[%s411 + $0x74] sm:$0xf]
          %v633 = vld [vmem:[%s411 + $0x78] sm:$0xf]
          %v634 = vld [vmem:[%s411 + $0x7c] sm:$0xf]
          %v637 = vunpack.c.l.s4 1966171168
          %v638 = vunpack.c.0.s8 %v637
          %v639 = vlaneseq
          %v640 = vshrl.u32 %v639, 7
          %v641 = vsub.s32 %v638, %v640
          %v642 = vrot.slane %v602, %v641
          %v643 = vcombine.high %v642, %v642
          %v645 = vunpack.c.l.s4 1966171168
          %v646 = vunpack.c.0.s8 %v645
          %v647 = vlaneseq
          %v648 = vshrl.u32 %v647, 7
          %v649 = vsub.s32 %v646, %v648
          %v650 = vrot.slane %v642, %v649
          %v652 = vunpack.c.l.s4 1966171168
          %v653 = vunpack.c.0.s8 %v652
          %v654 = vlaneseq
          %v655 = vshrl.u32 %v654, 7
          %v656 = vsub.s32 %v653, %v655
          %v657 = vrot.slane %v643, %v656
          %v692 = vunpack.c.l.b16 %v603
          %v693 = vunpack.c.l.b16 %v604
          %v694 = vunpack.c.l.b16 %v605
          %v695 = vunpack.c.l.b16 %v606
          %v696 = vunpack.c.l.b16 %v607
          %v697 = vunpack.c.l.b16 %v608
          %v698 = vunpack.c.l.b16 %v609
          %v699 = vunpack.c.l.b16 %v610
          %v700 = vunpack.c.l.b16 %v611
          %v701 = vunpack.c.l.b16 %v612
          %v702 = vunpack.c.l.b16 %v613
          %v703 = vunpack.c.l.b16 %v614
          %v704 = vunpack.c.l.b16 %v615
          %v705 = vunpack.c.l.b16 %v616
          %v706 = vunpack.c.l.b16 %v617
          %v707 = vunpack.c.l.b16 %v618
          %v708 = vunpack.c.l.b16 %v619
          %v709 = vunpack.c.l.b16 %v620
          %v710 = vunpack.c.l.b16 %v621
          %v711 = vunpack.c.l.b16 %v622
          %v712 = vunpack.c.l.b16 %v623
          %v713 = vunpack.c.l.b16 %v624
          %v714 = vunpack.c.l.b16 %v625
          %v715 = vunpack.c.l.b16 %v626
          %v716 = vunpack.c.l.b16 %v627
          %v717 = vunpack.c.l.b16 %v628
          %v718 = vunpack.c.l.b16 %v629
          %v719 = vunpack.c.l.b16 %v630
          %v720 = vunpack.c.l.b16 %v631
          %v721 = vunpack.c.l.b16 %v632
          %v722 = vunpack.c.l.b16 %v633
          %v723 = vunpack.c.l.b16 %v634
          %v724 = vpack.c.b16 %v693, %v692
          %v725 = vpack.c.b16 %v695, %v694
          %v726 = vpack.c.b16 %v697, %v696
          %v727 = vpack.c.b16 %v699, %v698
          %v728 = vpack.c.b16 %v701, %v700
          %v729 = vpack.c.b16 %v703, %v702
          %v730 = vpack.c.b16 %v705, %v704
          %v731 = vpack.c.b16 %v707, %v706
          %v732 = vpack.c.b16 %v709, %v708
          %v733 = vpack.c.b16 %v711, %v710
          %v734 = vpack.c.b16 %v713, %v712
          %v735 = vpack.c.b16 %v715, %v714
          %v736 = vpack.c.b16 %v717, %v716
          %v737 = vpack.c.b16 %v719, %v718
          %v738 = vpack.c.b16 %v721, %v720
          %v739 = vpack.c.b16 %v723, %v722
          %756 = vmatprep.subr.bf16.mxu0 0
          %757 = vmatpush1.bf16.msra.mxu0 %v731
          %758 = vmatprep.subr.bf16.mxu0 0
          %759 = vmatpush1.bf16.msra.mxu0 %v730
          %760 = vmatprep.subr.bf16.mxu0 0
          %761 = vmatpush1.bf16.msra.mxu0 %v729
          %762 = vmatprep.subr.bf16.mxu0 0
          %763 = vmatpush1.bf16.msra.mxu0 %v728
          %764 = vmatprep.subr.bf16.mxu0 0
          %765 = vmatpush1.bf16.msra.mxu0 %v727
          %766 = vmatprep.subr.bf16.mxu0 0
          %767 = vmatpush1.bf16.msra.mxu0 %v726
          %768 = vmatprep.subr.bf16.mxu0 0
          %769 = vmatpush1.bf16.msra.mxu0 %v725
          %770 = vmatprep.subr.bf16.mxu0 0
          %771 = vmatpush1.bf16.msra.mxu0 %v724
          %772 = vmatprep.subr.bf16.mxu0 0
          %773 = vmatpush2.bf16.msra.mxu0 %v739
          %774 = vmatprep.subr.bf16.mxu0 0
          %775 = vmatpush2.bf16.msra.mxu0 %v738
          %776 = vmatprep.subr.bf16.mxu0 0
          %777 = vmatpush2.bf16.msra.mxu0 %v737
          %778 = vmatprep.subr.bf16.mxu0 0
          %779 = vmatpush2.bf16.msra.mxu0 %v736
          %780 = vmatprep.subr.bf16.mxu0 0
          %781 = vmatpush2.bf16.msra.mxu0 %v735
          %782 = vmatprep.subr.bf16.mxu0 0
          %783 = vmatpush2.bf16.msra.mxu0 %v734
          %784 = vmatprep.subr.bf16.mxu0 0
          %785 = vmatpush2.bf16.msra.mxu0 %v733
          %786 = vmatprep.subr.bf16.mxu0 0
          %787 = vmatpush2.bf16.msra.mxu0 %v732
          %788 = vmatprep.mubr.bf16.mxu0 %v657
          %789 = vmatmul.mubr.bf16.gmra.mxu0 %v650
          %v790 = vpop.f32.mrf.mxu0
          %v791 = vadd.f32 0.0, %v790
          %v792 = vpop.f32.mrf.mxu0
          %v793 = vpop.f32.mrf.mxu0
          %v794 = vpop.f32.mrf.mxu0
          %795 = vdwg.mxu0
          %v796 = vld [vmem:[#allocation4] sm:$0xff]
          %v797 = vld [vmem:[#allocation4 + $0x8] sm:$0xff]
          %v798 = vpack.c.bf16 %v791, %v791
          %v799 = vld [vmem:[%s420] sm:$0xff]
          %v800 = vld [vmem:[%s420 + $0x8] sm:$0xff]
          %v801 = vld [vmem:[%s420 + $0x10] sm:$0xff]
          %v802 = vld [vmem:[%s420 + $0x18] sm:$0xff]
          %v803 = vld [vmem:[%s420 + $0x20] sm:$0xff]
          %v804 = vld [vmem:[%s420 + $0x28] sm:$0xff]
          %v805 = vld [vmem:[%s420 + $0x30] sm:$0xff]
          %v806 = vld [vmem:[%s420 + $0x38] sm:$0xff]
          %v807 = vld [vmem:[%s420 + $0x40] sm:$0xff]
          %v808 = vld [vmem:[%s420 + $0x48] sm:$0xff]
          %v809 = vld [vmem:[%s420 + $0x50] sm:$0xff]
          %v810 = vld [vmem:[%s420 + $0x58] sm:$0xff]
          %v811 = vld [vmem:[%s420 + $0x60] sm:$0xff]
          %v812 = vld [vmem:[%s420 + $0x68] sm:$0xff]
          %v813 = vld [vmem:[%s420 + $0x70] sm:$0xff]
          %v814 = vld [vmem:[%s420 + $0x78] sm:$0xff]
          %v815 = vld [vmem:[%s420 + $0x80] sm:$0xff]
          %v816 = vld [vmem:[%s420 + $0x88] sm:$0xff]
          %v817 = vld [vmem:[%s420 + $0x90] sm:$0xff]
          %v818 = vld [vmem:[%s420 + $0x98] sm:$0xff]
          %v819 = vld [vmem:[%s420 + $0xa0] sm:$0xff]
          %v820 = vld [vmem:[%s420 + $0xa8] sm:$0xff]
          %v821 = vld [vmem:[%s420 + $0xb0] sm:$0xff]
          %v822 = vld [vmem:[%s420 + $0xb8] sm:$0xff]
          %v823 = vld [vmem:[%s420 + $0xc0] sm:$0xff]
          %v824 = vld [vmem:[%s420 + $0xc8] sm:$0xff]
          %v825 = vld [vmem:[%s420 + $0xd0] sm:$0xff]
          %v826 = vld [vmem:[%s420 + $0xd8] sm:$0xff]
          %v827 = vld [vmem:[%s420 + $0xe0] sm:$0xff]
          %v828 = vld [vmem:[%s420 + $0xe8] sm:$0xff]
          %v829 = vld [vmem:[%s420 + $0xf0] sm:$0xff]
          %v830 = vld [vmem:[%s420 + $0xf8] sm:$0xff]
          %v831 = vld [vmem:[%s420 + $0x100] sm:$0xff]
          %v832 = vld [vmem:[%s420 + $0x108] sm:$0xff]
          %v833 = vld [vmem:[%s420 + $0x110] sm:$0xff]
          %v834 = vld [vmem:[%s420 + $0x118] sm:$0xff]
          %v835 = vld [vmem:[%s420 + $0x120] sm:$0xff]
          %v836 = vld [vmem:[%s420 + $0x128] sm:$0xff]
          %v837 = vld [vmem:[%s420 + $0x130] sm:$0xff]
          %v838 = vld [vmem:[%s420 + $0x138] sm:$0xff]
          %v839 = vld [vmem:[%s420 + $0x140] sm:$0xff]
          %v840 = vld [vmem:[%s420 + $0x148] sm:$0xff]
          %v841 = vld [vmem:[%s420 + $0x150] sm:$0xff]
          %v842 = vld [vmem:[%s420 + $0x158] sm:$0xff]
          %v843 = vld [vmem:[%s420 + $0x160] sm:$0xff]
          %v844 = vld [vmem:[%s420 + $0x168] sm:$0xff]
          %v845 = vld [vmem:[%s420 + $0x170] sm:$0xff]
          %v846 = vld [vmem:[%s420 + $0x178] sm:$0xff]
          %v847 = vld [vmem:[%s420 + $0x180] sm:$0xff]
          %v848 = vld [vmem:[%s420 + $0x188] sm:$0xff]
          %v849 = vld [vmem:[%s420 + $0x190] sm:$0xff]
          %v850 = vld [vmem:[%s420 + $0x198] sm:$0xff]
          %v851 = vld [vmem:[%s420 + $0x1a0] sm:$0xff]
          %v852 = vld [vmem:[%s420 + $0x1a8] sm:$0xff]
          %v853 = vld [vmem:[%s420 + $0x1b0] sm:$0xff]
          %v854 = vld [vmem:[%s420 + $0x1b8] sm:$0xff]
          %v855 = vld [vmem:[%s420 + $0x1c0] sm:$0xff]
          %v856 = vld [vmem:[%s420 + $0x1c8] sm:$0xff]
          %v857 = vld [vmem:[%s420 + $0x1d0] sm:$0xff]
          %v858 = vld [vmem:[%s420 + $0x1d8] sm:$0xff]
          %v859 = vld [vmem:[%s420 + $0x1e0] sm:$0xff]
          %v860 = vld [vmem:[%s420 + $0x1e8] sm:$0xff]
          %v861 = vld [vmem:[%s420 + $0x1f0] sm:$0xff]
          %v862 = vld [vmem:[%s420 + $0x1f8] sm:$0xff]
          %v927 = vunpack.c.l.b16 %v799
          %v928 = vunpack.c.h.b16 %v799
          %v929 = vunpack.c.l.b16 %v800
          %v930 = vunpack.c.h.b16 %v800
          %v931 = vunpack.c.l.b16 %v801
          %v932 = vunpack.c.h.b16 %v801
          %v933 = vunpack.c.l.b16 %v802
          %v934 = vunpack.c.h.b16 %v802
          %v935 = vunpack.c.l.b16 %v803
          %v936 = vunpack.c.h.b16 %v803
          %v937 = vunpack.c.l.b16 %v804
          %v938 = vunpack.c.h.b16 %v804
          %v939 = vunpack.c.l.b16 %v805
          %v940 = vunpack.c.h.b16 %v805
          %v941 = vunpack.c.l.b16 %v806
          %v942 = vunpack.c.h.b16 %v806
          %v943 = vunpack.c.l.b16 %v807
          %v944 = vunpack.c.h.b16 %v807
          %v945 = vunpack.c.l.b16 %v808
          %v946 = vunpack.c.h.b16 %v808
          %v947 = vunpack.c.l.b16 %v809
          %v948 = vunpack.c.h.b16 %v809
          %v949 = vunpack.c.l.b16 %v810
          %v950 = vunpack.c.h.b16 %v810
          %v951 = vunpack.c.l.b16 %v811
          %v952 = vunpack.c.h.b16 %v811
          %v953 = vunpack.c.l.b16 %v812
          %v954 = vunpack.c.h.b16 %v812
          %v955 = vunpack.c.l.b16 %v813
          %v956 = vunpack.c.h.b16 %v813
          %v957 = vunpack.c.l.b16 %v814
          %v958 = vunpack.c.h.b16 %v814
          %v959 = vunpack.c.l.b16 %v815
          %v960 = vunpack.c.h.b16 %v815
          %v961 = vunpack.c.l.b16 %v816
          %v962 = vunpack.c.h.b16 %v816
          %v963 = vunpack.c.l.b16 %v817
          %v964 = vunpack.c.h.b16 %v817
          %v965 = vunpack.c.l.b16 %v818
          %v966 = vunpack.c.h.b16 %v818
          %v967 = vunpack.c.l.b16 %v819
          %v968 = vunpack.c.h.b16 %v819
          %v969 = vunpack.c.l.b16 %v820
          %v970 = vunpack.c.h.b16 %v820
          %v971 = vunpack.c.l.b16 %v821
          %v972 = vunpack.c.h.b16 %v821
          %v973 = vunpack.c.l.b16 %v822
          %v974 = vunpack.c.h.b16 %v822
          %v975 = vunpack.c.l.b16 %v823
          %v976 = vunpack.c.h.b16 %v823
          %v977 = vunpack.c.l.b16 %v824
          %v978 = vunpack.c.h.b16 %v824
          %v979 = vunpack.c.l.b16 %v825
          %v980 = vunpack.c.h.b16 %v825
          %v981 = vunpack.c.l.b16 %v826
          %v982 = vunpack.c.h.b16 %v826
          %v983 = vunpack.c.l.b16 %v827
          %v984 = vunpack.c.h.b16 %v827
          %v985 = vunpack.c.l.b16 %v828
          %v986 = vunpack.c.h.b16 %v828
          %v987 = vunpack.c.l.b16 %v829
          %v988 = vunpack.c.h.b16 %v829
          %v989 = vunpack.c.l.b16 %v830
          %v990 = vunpack.c.h.b16 %v830
          %v991 = vunpack.c.l.b16 %v831
          %v992 = vunpack.c.h.b16 %v831
          %v993 = vunpack.c.l.b16 %v832
          %v994 = vunpack.c.h.b16 %v832
          %v995 = vunpack.c.l.b16 %v833
          %v996 = vunpack.c.h.b16 %v833
          %v997 = vunpack.c.l.b16 %v834
          %v998 = vunpack.c.h.b16 %v834
          %v999 = vunpack.c.l.b16 %v835
          %v1000 = vunpack.c.h.b16 %v835
          %v1001 = vunpack.c.l.b16 %v836
          %v1002 = vunpack.c.h.b16 %v836
          %v1003 = vunpack.c.l.b16 %v837
          %v1004 = vunpack.c.h.b16 %v837
          %v1005 = vunpack.c.l.b16 %v838
          %v1006 = vunpack.c.h.b16 %v838
          %v1007 = vunpack.c.l.b16 %v839
          %v1008 = vunpack.c.h.b16 %v839
          %v1009 = vunpack.c.l.b16 %v840
          %v1010 = vunpack.c.h.b16 %v840
          %v1011 = vunpack.c.l.b16 %v841
          %v1012 = vunpack.c.h.b16 %v841
          %v1013 = vunpack.c.l.b16 %v842
          %v1014 = vunpack.c.h.b16 %v842
          %v1015 = vunpack.c.l.b16 %v843
          %v1016 = vunpack.c.h.b16 %v843
          %v1017 = vunpack.c.l.b16 %v844
          %v1018 = vunpack.c.h.b16 %v844
          %v1019 = vunpack.c.l.b16 %v845
          %v1020 = vunpack.c.h.b16 %v845
          %v1021 = vunpack.c.l.b16 %v846
          %v1022 = vunpack.c.h.b16 %v846
          %v1023 = vunpack.c.l.b16 %v847
          %v1024 = vunpack.c.h.b16 %v847
          %v1025 = vunpack.c.l.b16 %v848
          %v1026 = vunpack.c.h.b16 %v848
          %v1027 = vunpack.c.l.b16 %v849
          %v1028 = vunpack.c.h.b16 %v849
          %v1029 = vunpack.c.l.b16 %v850
          %v1030 = vunpack.c.h.b16 %v850
          %v1031 = vunpack.c.l.b16 %v851
          %v1032 = vunpack.c.h.b16 %v851
          %v1033 = vunpack.c.l.b16 %v852
          %v1034 = vunpack.c.h.b16 %v852
          %v1035 = vunpack.c.l.b16 %v853
          %v1036 = vunpack.c.h.b16 %v853
          %v1037 = vunpack.c.l.b16 %v854
          %v1038 = vunpack.c.h.b16 %v854
          %v1039 = vunpack.c.l.b16 %v855
          %v1040 = vunpack.c.h.b16 %v855
          %v1041 = vunpack.c.l.b16 %v856
          %v1042 = vunpack.c.h.b16 %v856
          %v1043 = vunpack.c.l.b16 %v857
          %v1044 = vunpack.c.h.b16 %v857
          %v1045 = vunpack.c.l.b16 %v858
          %v1046 = vunpack.c.h.b16 %v858
          %v1047 = vunpack.c.l.b16 %v859
          %v1048 = vunpack.c.h.b16 %v859
          %v1049 = vunpack.c.l.b16 %v860
          %v1050 = vunpack.c.h.b16 %v860
          %v1051 = vunpack.c.l.b16 %v861
          %v1052 = vunpack.c.h.b16 %v861
          %v1053 = vunpack.c.l.b16 %v862
          %v1054 = vunpack.c.h.b16 %v862
          %v1055 = vpack.c.b16 %v935, %v927
          %v1056 = vpack.c.b16 %v936, %v928
          %v1057 = vpack.c.b16 %v937, %v929
          %v1058 = vpack.c.b16 %v938, %v930
          %v1059 = vpack.c.b16 %v939, %v931
          %v1060 = vpack.c.b16 %v940, %v932
          %v1061 = vpack.c.b16 %v941, %v933
          %v1062 = vpack.c.b16 %v942, %v934
          %v1063 = vpack.c.b16 %v951, %v943
          %v1064 = vpack.c.b16 %v952, %v944
          %v1065 = vpack.c.b16 %v953, %v945
          %v1066 = vpack.c.b16 %v954, %v946
          %v1067 = vpack.c.b16 %v955, %v947
          %v1068 = vpack.c.b16 %v956, %v948
          %v1069 = vpack.c.b16 %v957, %v949
          %v1070 = vpack.c.b16 %v958, %v950
          %v1071 = vpack.c.b16 %v967, %v959
          %v1072 = vpack.c.b16 %v968, %v960
          %v1073 = vpack.c.b16 %v969, %v961
          %v1074 = vpack.c.b16 %v970, %v962
          %v1075 = vpack.c.b16 %v971, %v963
          %v1076 = vpack.c.b16 %v972, %v964
          %v1077 = vpack.c.b16 %v973, %v965
          %v1078 = vpack.c.b16 %v974, %v966
          %v1079 = vpack.c.b16 %v983, %v975
          %v1080 = vpack.c.b16 %v984, %v976
          %v1081 = vpack.c.b16 %v985, %v977
          %v1082 = vpack.c.b16 %v986, %v978
          %v1083 = vpack.c.b16 %v987, %v979
          %v1084 = vpack.c.b16 %v988, %v980
          %v1085 = vpack.c.b16 %v989, %v981
          %v1086 = vpack.c.b16 %v990, %v982
          %v1087 = vpack.c.b16 %v999, %v991
          %v1088 = vpack.c.b16 %v1000, %v992
          %v1089 = vpack.c.b16 %v1001, %v993
          %v1090 = vpack.c.b16 %v1002, %v994
          %v1091 = vpack.c.b16 %v1003, %v995
          %v1092 = vpack.c.b16 %v1004, %v996
          %v1093 = vpack.c.b16 %v1005, %v997
          %v1094 = vpack.c.b16 %v1006, %v998
          %v1095 = vpack.c.b16 %v1015, %v1007
          %v1096 = vpack.c.b16 %v1016, %v1008
          %v1097 = vpack.c.b16 %v1017, %v1009
          %v1098 = vpack.c.b16 %v1018, %v1010
          %v1099 = vpack.c.b16 %v1019, %v1011
          %v1100 = vpack.c.b16 %v1020, %v1012
          %v1101 = vpack.c.b16 %v1021, %v1013
          %v1102 = vpack.c.b16 %v1022, %v1014
          %v1103 = vpack.c.b16 %v1031, %v1023
          %v1104 = vpack.c.b16 %v1032, %v1024
          %v1105 = vpack.c.b16 %v1033, %v1025
          %v1106 = vpack.c.b16 %v1034, %v1026
          %v1107 = vpack.c.b16 %v1035, %v1027
          %v1108 = vpack.c.b16 %v1036, %v1028
          %v1109 = vpack.c.b16 %v1037, %v1029
          %v1110 = vpack.c.b16 %v1038, %v1030
          %v1111 = vpack.c.b16 %v1047, %v1039
          %v1112 = vpack.c.b16 %v1048, %v1040
          %v1113 = vpack.c.b16 %v1049, %v1041
          %v1114 = vpack.c.b16 %v1050, %v1042
          %v1115 = vpack.c.b16 %v1051, %v1043
          %v1116 = vpack.c.b16 %v1052, %v1044
          %v1117 = vpack.c.b16 %v1053, %v1045
          %v1118 = vpack.c.b16 %v1054, %v1046
          %1183 = vmatprep.subr.bf16.mxu0 %v1112
          %1184 = vmatpush1.bf16.msra.mxu0 %v1111
          %1185 = vmatprep.subr.bf16.mxu0 %v1104
          %1186 = vmatpush1.bf16.msra.mxu0 %v1103
          %1187 = vmatprep.subr.bf16.mxu0 %v1096
          %1188 = vmatpush1.bf16.msra.mxu0 %v1095
          %1189 = vmatprep.subr.bf16.mxu0 %v1088
          %1190 = vmatpush1.bf16.msra.mxu0 %v1087
          %1191 = vmatprep.subr.bf16.mxu0 %v1080
          %1192 = vmatpush1.bf16.msra.mxu0 %v1079
          %1193 = vmatprep.subr.bf16.mxu0 %v1072
          %1194 = vmatpush1.bf16.msra.mxu0 %v1071
          %1195 = vmatprep.subr.bf16.mxu0 %v1064
          %1196 = vmatpush1.bf16.msra.mxu0 %v1063
          %1197 = vmatprep.subr.bf16.mxu0 %v1056
          %1198 = vmatpush1.bf16.msra.mxu0 %v1055
          %1199 = vmatprep.subr.bf16.mxu0 0
          %1200 = vmatpush2.bf16.msra.mxu0 0
          %1201 = vmatprep.subr.bf16.mxu0 0
          %1202 = vmatpush2.bf16.msra.mxu0 0
          %1203 = vmatprep.subr.bf16.mxu0 0
          %1204 = vmatpush2.bf16.msra.mxu0 0
          %1205 = vmatprep.subr.bf16.mxu0 0
          %1206 = vmatpush2.bf16.msra.mxu0 0
          %1207 = vmatprep.subr.bf16.mxu0 0
          %1208 = vmatpush2.bf16.msra.mxu0 0
          %1209 = vmatprep.subr.bf16.mxu0 0
          %1210 = vmatpush2.bf16.msra.mxu0 0
          %1211 = vmatprep.subr.bf16.mxu0 0
          %1212 = vmatpush2.bf16.msra.mxu0 0
          %1213 = vmatprep.subr.bf16.mxu0 0
          %1214 = vmatpush2.bf16.msra.mxu0 0
          %1215 = vmatprep.mubr.bf16.mxu0 0
          %1216 = vmatmul.mubr.bf16.gmra.mxu0 %v798
          %v1217 = vpop.f32.mrf.mxu0
          %v1218 = vadd.f32 0.0, %v1217
          %v1219 = vpop.f32.mrf.mxu0
          %v1220 = vadd.f32 0.0, %v1219
          %v1221 = vpop.f32.mrf.mxu0
          %v1222 = vpop.f32.mrf.mxu0
          %1223 = vdwg.mxu0
          %1224 = vmatprep.subr.bf16.mxu0 %v1114
          %1225 = vmatpush1.bf16.msra.mxu0 %v1113
          %1226 = vmatprep.subr.bf16.mxu0 %v1106
          %1227 = vmatpush1.bf16.msra.mxu0 %v1105
          %1228 = vmatprep.subr.bf16.mxu0 %v1098
          %1229 = vmatpush1.bf16.msra.mxu0 %v1097
          %1230 = vmatprep.subr.bf16.mxu0 %v1090
          %1231 = vmatpush1.bf16.msra.mxu0 %v1089
          %1232 = vmatprep.subr.bf16.mxu0 %v1082
          %1233 = vmatpush1.bf16.msra.mxu0 %v1081
          %1234 = vmatprep.subr.bf16.mxu0 %v1074
          %1235 = vmatpush1.bf16.msra.mxu0 %v1073
          %1236 = vmatprep.subr.bf16.mxu0 %v1066
          %1237 = vmatpush1.bf16.msra.mxu0 %v1065
          %1238 = vmatprep.subr.bf16.mxu0 %v1058
          %1239 = vmatpush1.bf16.msra.mxu0 %v1057
          %1240 = vmatprep.subr.bf16.mxu0 0
          %1241 = vmatpush2.bf16.msra.mxu0 0
          %1242 = vmatprep.subr.bf16.mxu0 0
          %1243 = vmatpush2.bf16.msra.mxu0 0
          %1244 = vmatprep.subr.bf16.mxu0 0
          %1245 = vmatpush2.bf16.msra.mxu0 0
          %1246 = vmatprep.subr.bf16.mxu0 0
          %1247 = vmatpush2.bf16.msra.mxu0 0
          %1248 = vmatprep.subr.bf16.mxu0 0
          %1249 = vmatpush2.bf16.msra.mxu0 0
          %1250 = vmatprep.subr.bf16.mxu0 0
          %1251 = vmatpush2.bf16.msra.mxu0 0
          %1252 = vmatprep.subr.bf16.mxu0 0
          %1253 = vmatpush2.bf16.msra.mxu0 0
          %1254 = vmatprep.subr.bf16.mxu0 0
          %1255 = vmatpush2.bf16.msra.mxu0 0
          %1256 = vmatprep.mubr.bf16.mxu0 0
          %1257 = vmatmul.mubr.bf16.gmra.mxu0 %v798
          %v1258 = vpop.f32.mrf.mxu0
          %v1259 = vadd.f32 0.0, %v1258
          %v1260 = vpop.f32.mrf.mxu0
          %v1261 = vadd.f32 0.0, %v1260
          %v1262 = vpop.f32.mrf.mxu0
          %v1263 = vpop.f32.mrf.mxu0
          %1264 = vdwg.mxu0
          %1265 = vmatprep.subr.bf16.mxu0 %v1116
          %1266 = vmatpush1.bf16.msra.mxu0 %v1115
          %1267 = vmatprep.subr.bf16.mxu0 %v1108
          %1268 = vmatpush1.bf16.msra.mxu0 %v1107
          %1269 = vmatprep.subr.bf16.mxu0 %v1100
          %1270 = vmatpush1.bf16.msra.mxu0 %v1099
          %1271 = vmatprep.subr.bf16.mxu0 %v1092
          %1272 = vmatpush1.bf16.msra.mxu0 %v1091
          %1273 = vmatprep.subr.bf16.mxu0 %v1084
          %1274 = vmatpush1.bf16.msra.mxu0 %v1083
          %1275 = vmatprep.subr.bf16.mxu0 %v1076
          %1276 = vmatpush1.bf16.msra.mxu0 %v1075
          %1277 = vmatprep.subr.bf16.mxu0 %v1068
          %1278 = vmatpush1.bf16.msra.mxu0 %v1067
          %1279 = vmatprep.subr.bf16.mxu0 %v1060
          %1280 = vmatpush1.bf16.msra.mxu0 %v1059
          %1281 = vmatprep.subr.bf16.mxu0 0
          %1282 = vmatpush2.bf16.msra.mxu0 0
          %1283 = vmatprep.subr.bf16.mxu0 0
          %1284 = vmatpush2.bf16.msra.mxu0 0
          %1285 = vmatprep.subr.bf16.mxu0 0
          %1286 = vmatpush2.bf16.msra.mxu0 0
          %1287 = vmatprep.subr.bf16.mxu0 0
          %1288 = vmatpush2.bf16.msra.mxu0 0
          %1289 = vmatprep.subr.bf16.mxu0 0
          %1290 = vmatpush2.bf16.msra.mxu0 0
          %1291 = vmatprep.subr.bf16.mxu0 0
          %1292 = vmatpush2.bf16.msra.mxu0 0
          %1293 = vmatprep.subr.bf16.mxu0 0
          %1294 = vmatpush2.bf16.msra.mxu0 0
          %1295 = vmatprep.subr.bf16.mxu0 0
          %1296 = vmatpush2.bf16.msra.mxu0 0
          %1297 = vmatprep.mubr.bf16.mxu0 0
          %1298 = vmatmul.mubr.bf16.gmra.mxu0 %v798
          %v1299 = vpop.f32.mrf.mxu0
          %v1300 = vadd.f32 0.0, %v1299
          %v1301 = vpop.f32.mrf.mxu0
          %v1302 = vadd.f32 0.0, %v1301
          %v1303 = vpop.f32.mrf.mxu0
          %v1304 = vpop.f32.mrf.mxu0
          %1305 = vdwg.mxu0
          %1306 = vmatprep.subr.bf16.mxu0 %v1118
          %1307 = vmatpush1.bf16.msra.mxu0 %v1117
          %1308 = vmatprep.subr.bf16.mxu0 %v1110
          %1309 = vmatpush1.bf16.msra.mxu0 %v1109
          %1310 = vmatprep.subr.bf16.mxu0 %v1102
          %1311 = vmatpush1.bf16.msra.mxu0 %v1101
          %1312 = vmatprep.subr.bf16.mxu0 %v1094
          %1313 = vmatpush1.bf16.msra.mxu0 %v1093
          %1314 = vmatprep.subr.bf16.mxu0 %v1086
          %1315 = vmatpush1.bf16.msra.mxu0 %v1085
          %1316 = vmatprep.subr.bf16.mxu0 %v1078
          %1317 = vmatpush1.bf16.msra.mxu0 %v1077
          %1318 = vmatprep.subr.bf16.mxu0 %v1070
          %1319 = vmatpush1.bf16.msra.mxu0 %v1069
          %1320 = vmatprep.subr.bf16.mxu0 %v1062
          %1321 = vmatpush1.bf16.msra.mxu0 %v1061
          %1322 = vmatprep.subr.bf16.mxu0 0
          %1323 = vmatpush2.bf16.msra.mxu0 0
          %1324 = vmatprep.subr.bf16.mxu0 0
          %1325 = vmatpush2.bf16.msra.mxu0 0
          %1326 = vmatprep.subr.bf16.mxu0 0
          %1327 = vmatpush2.bf16.msra.mxu0 0
          %1328 = vmatprep.subr.bf16.mxu0 0
          %1329 = vmatpush2.bf16.msra.mxu0 0
          %1330 = vmatprep.subr.bf16.mxu0 0
          %1331 = vmatpush2.bf16.msra.mxu0 0
          %1332 = vmatprep.subr.bf16.mxu0 0
          %1333 = vmatpush2.bf16.msra.mxu0 0
          %1334 = vmatprep.subr.bf16.mxu0 0
          %1335 = vmatpush2.bf16.msra.mxu0 0
          %1336 = vmatprep.subr.bf16.mxu0 0
          %1337 = vmatpush2.bf16.msra.mxu0 0
          %1338 = vmatprep.mubr.bf16.mxu0 0
          %1339 = vmatmul.mubr.bf16.gmra.mxu0 %v798
          %v1340 = vpop.f32.mrf.mxu0
          %v1341 = vadd.f32 0.0, %v1340
          %v1342 = vpop.f32.mrf.mxu0
          %v1343 = vadd.f32 0.0, %v1342
          %v1344 = vpop.f32.mrf.mxu0
          %v1345 = vpop.f32.mrf.mxu0
          %1346 = vdwg.mxu0
          %v1355 = vcombine.low %v1218, %v1220
          %v1356 = vcombine.low %v1259, %v1261
          %v1358 = vunpack.c.l.s4 1983009808
          %v1359 = vunpack.c.0.s8 %v1358
          %v1360 = vlaneseq
          %v1361 = vshrl.u32 %v1360, 7
          %v1362 = vsub.s32 %v1359, %v1361
          %v1363 = vrot.slane %v1355, %v1362
          %v1365 = vunpack.c.l.s4 1983009808
          %v1366 = vunpack.c.0.s8 %v1365
          %v1367 = vlaneseq
          %v1368 = vshrl.u32 %v1367, 7
          %v1369 = vsub.s32 %v1366, %v1368
          %v1370 = vrot.slane %v1356, %v1369
          %v1371 = vcombine.low %v1363, %v1370
          %v1372 = vcombine.low %v1300, %v1302
          %v1373 = vcombine.low %v1341, %v1343
          %v1375 = vunpack.c.l.s4 1983009808
          %v1376 = vunpack.c.0.s8 %v1375
          %v1377 = vlaneseq
          %v1378 = vshrl.u32 %v1377, 7
          %v1379 = vsub.s32 %v1376, %v1378
          %v1380 = vrot.slane %v1372, %v1379
          %v1382 = vunpack.c.l.s4 1983009808
          %v1383 = vunpack.c.0.s8 %v1382
          %v1384 = vlaneseq
          %v1385 = vshrl.u32 %v1384, 7
          %v1386 = vsub.s32 %v1383, %v1385
          %v1387 = vrot.slane %v1373, %v1386
          %v1388 = vcombine.low %v1380, %v1387
          %v1391 = vadd.f32 %v796, %v1371
          %v1392 = vadd.f32 %v797, %v1388
          %1393 = vst [vmem:[#allocation4] sm:$0xff] %v1391
          %1394 = vst [vmem:[#allocation4 + $0x8] sm:$0xff] %v1392
          %p1395 = scmp.eq.s32.totalorder %s27, 3
          // Predicated region
          $region119: #{_forward.1} parent=117 // pred_check
            %p1396 = pneg %p1395
          $region120: #{_forward.1} parent=117 // pred_check_branch
            %1398 = sbr.rel (%p1396) target = $region122
          $region121: #{_forward.1} parent=117 // pred_region
            %v1399 = vld [vmem:[#allocation4] sm:$0xff]
            %v1400 = vld [vmem:[#allocation4 + $0x8] sm:$0xff]
            %v1401 = vld [vmem:[%s3] sm:$0xff]
            %v1403 = vlaneseq
            %v1404 = vshrl.u32 %v1403, 7
            %v1405 = vsub.s32 0, %v1404
            %v1406 = vrot.slane %v1401, %v1405
            %v1407 = vlaneseq
            %v1408 = vshrl.u32 %v1407, 7
            %v1409 = vsub.s32 1, %v1408
            %v1410 = vrot.slane %v1401, %v1409
            %v1411 = vlaneseq
            %v1412 = vshrl.u32 %v1411, 7
            %v1413 = vsub.s32 2, %v1412
            %v1414 = vrot.slane %v1401, %v1413
            %v1415 = vlaneseq
            %v1416 = vshrl.u32 %v1415, 7
            %v1417 = vsub.s32 3, %v1416
            %v1418 = vrot.slane %v1401, %v1417
            %v1419 = vlaneseq
            %v1420 = vshrl.u32 %v1419, 7
            %v1421 = vsub.s32 4, %v1420
            %v1422 = vrot.slane %v1401, %v1421
            %v1423 = vlaneseq
            %v1424 = vshrl.u32 %v1423, 7
            %v1425 = vsub.s32 5, %v1424
            %v1426 = vrot.slane %v1401, %v1425
            %v1427 = vlaneseq
            %v1428 = vshrl.u32 %v1427, 7
            %v1429 = vsub.s32 6, %v1428
            %v1430 = vrot.slane %v1401, %v1429
            %v1431 = vlaneseq
            %v1432 = vshrl.u32 %v1431, 7
            %v1433 = vsub.s32 7, %v1432
            %v1434 = vrot.slane %v1401, %v1433
            %v1435 = vcombine.low %v1406, %v1410
            %v1436 = vcombine.low %v1414, %v1418
            %v1438 = vunpack.c.l.s4 1983009808
            %v1439 = vunpack.c.0.s8 %v1438
            %v1440 = vlaneseq
            %v1441 = vshrl.u32 %v1440, 7
            %v1442 = vsub.s32 %v1439, %v1441
            %v1443 = vrot.slane %v1435, %v1442
            %v1445 = vunpack.c.l.s4 1983009808
            %v1446 = vunpack.c.0.s8 %v1445
            %v1447 = vlaneseq
            %v1448 = vshrl.u32 %v1447, 7
            %v1449 = vsub.s32 %v1446, %v1448
            %v1450 = vrot.slane %v1436, %v1449
            %v1451 = vcombine.low %v1443, %v1450
            %v1452 = vcombine.low %v1422, %v1426
            %v1453 = vcombine.low %v1430, %v1434
            %v1455 = vunpack.c.l.s4 1983009808
            %v1456 = vunpack.c.0.s8 %v1455
            %v1457 = vlaneseq
            %v1458 = vshrl.u32 %v1457, 7
            %v1459 = vsub.s32 %v1456, %v1458
            %v1460 = vrot.slane %v1452, %v1459
            %v1462 = vunpack.c.l.s4 1983009808
            %v1463 = vunpack.c.0.s8 %v1462
            %v1464 = vlaneseq
            %v1465 = vshrl.u32 %v1464, 7
            %v1466 = vsub.s32 %v1463, %v1465
            %v1467 = vrot.slane %v1453, %v1466
            %v1468 = vcombine.low %v1460, %v1467
            %v1471 = vadd.f32 %v1399, %v1451
            %v1472 = vadd.f32 %v1400, %v1468
            %v1473 = vmax.f32 %v1471, 0.0
            %v1474 = vmax.f32 %v1472, 0.0
            %v1477 = vcombine.high %v1473, %v1473
            %v1479 = vunpack.c.l.s4 1983009808
            %v1480 = vunpack.c.0.s8 %v1479
            %v1481 = vlaneseq
            %v1482 = vshrl.u32 %v1481, 7
            %v1483 = vsub.s32 %v1480, %v1482
            %v1484 = vrot.slane %v1473, %v1483
            %v1486 = vunpack.c.l.s4 1983009808
            %v1487 = vunpack.c.0.s8 %v1486
            %v1488 = vlaneseq
            %v1489 = vshrl.u32 %v1488, 7
            %v1490 = vsub.s32 %v1487, %v1489
            %v1491 = vrot.slane %v1477, %v1490
            %v1492 = vcombine.high %v1484, %v1484
            %v1493 = vcombine.high %v1491, %v1491
            %v1494 = vcombine.high %v1474, %v1474
            %v1496 = vunpack.c.l.s4 1983009808
            %v1497 = vunpack.c.0.s8 %v1496
            %v1498 = vlaneseq
            %v1499 = vshrl.u32 %v1498, 7
            %v1500 = vsub.s32 %v1497, %v1499
            %v1501 = vrot.slane %v1474, %v1500
            %v1503 = vunpack.c.l.s4 1983009808
            %v1504 = vunpack.c.0.s8 %v1503
            %v1505 = vlaneseq
            %v1506 = vshrl.u32 %v1505, 7
            %v1507 = vsub.s32 %v1504, %v1506
            %v1508 = vrot.slane %v1494, %v1507
            %v1509 = vcombine.high %v1501, %v1501
            %v1510 = vcombine.high %v1508, %v1508
            %v1519 = vpack.c.bf16 %v1484, %v1484
            %v1520 = vpack.c.bf16 %v1492, %v1492
            %v1521 = vpack.c.bf16 %v1491, %v1491
            %v1522 = vpack.c.bf16 %v1493, %v1493
            %v1523 = vpack.c.bf16 %v1501, %v1501
            %v1524 = vpack.c.bf16 %v1509, %v1509
            %v1525 = vpack.c.bf16 %v1508, %v1508
            %v1526 = vpack.c.bf16 %v1510, %v1510
            %v1527 = vld [vmem:[#allocation11] sm:$0xf]
            %v1528 = vld [vmem:[#allocation11 + $0x4] sm:$0xf]
            %v1529 = vld [vmem:[#allocation11 + $0x8] sm:$0xf]
            %v1530 = vld [vmem:[#allocation11 + $0xc] sm:$0xf]
            %v1531 = vld [vmem:[#allocation11 + $0x10] sm:$0xf]
            %v1532 = vld [vmem:[#allocation11 + $0x14] sm:$0xf]
            %v1533 = vld [vmem:[#allocation11 + $0x18] sm:$0xf]
            %v1534 = vld [vmem:[#allocation11 + $0x1c] sm:$0xf]
            %v1535 = vld [vmem:[#allocation11 + $0x20] sm:$0xf]
            %v1536 = vld [vmem:[#allocation11 + $0x24] sm:$0xf]
            %v1537 = vld [vmem:[#allocation11 + $0x28] sm:$0xf]
            %v1538 = vld [vmem:[#allocation11 + $0x2c] sm:$0xf]
            %v1539 = vld [vmem:[#allocation11 + $0x30] sm:$0xf]
            %v1540 = vld [vmem:[#allocation11 + $0x34] sm:$0xf]
            %v1541 = vld [vmem:[#allocation11 + $0x38] sm:$0xf]
            %v1542 = vld [vmem:[#allocation11 + $0x3c] sm:$0xf]
            %v1543 = vld [vmem:[#allocation11 + $0x40] sm:$0xf]
            %v1544 = vld [vmem:[#allocation11 + $0x44] sm:$0xf]
            %v1545 = vld [vmem:[#allocation11 + $0x48] sm:$0xf]
            %v1546 = vld [vmem:[#allocation11 + $0x4c] sm:$0xf]
            %v1547 = vld [vmem:[#allocation11 + $0x50] sm:$0xf]
            %v1548 = vld [vmem:[#allocation11 + $0x54] sm:$0xf]
            %v1549 = vld [vmem:[#allocation11 + $0x58] sm:$0xf]
            %v1550 = vld [vmem:[#allocation11 + $0x5c] sm:$0xf]
            %v1551 = vld [vmem:[#allocation11 + $0x60] sm:$0xf]
            %v1552 = vld [vmem:[#allocation11 + $0x64] sm:$0xf]
            %v1553 = vld [vmem:[#allocation11 + $0x68] sm:$0xf]
            %v1554 = vld [vmem:[#allocation11 + $0x6c] sm:$0xf]
            %v1555 = vld [vmem:[#allocation11 + $0x70] sm:$0xf]
            %v1556 = vld [vmem:[#allocation11 + $0x74] sm:$0xf]
            %v1557 = vld [vmem:[#allocation11 + $0x78] sm:$0xf]
            %v1558 = vld [vmem:[#allocation11 + $0x7c] sm:$0xf]
            %v1559 = vld [vmem:[#allocation11 + $0x80] sm:$0xf]
            %v1560 = vld [vmem:[#allocation11 + $0x84] sm:$0xf]
            %v1561 = vld [vmem:[#allocation11 + $0x88] sm:$0xf]
            %v1562 = vld [vmem:[#allocation11 + $0x8c] sm:$0xf]
            %v1563 = vld [vmem:[#allocation11 + $0x90] sm:$0xf]
            %v1564 = vld [vmem:[#allocation11 + $0x94] sm:$0xf]
            %v1565 = vld [vmem:[#allocation11 + $0x98] sm:$0xf]
            %v1566 = vld [vmem:[#allocation11 + $0x9c] sm:$0xf]
            %v1567 = vld [vmem:[#allocation11 + $0xa0] sm:$0xf]
            %v1568 = vld [vmem:[#allocation11 + $0xa4] sm:$0xf]
            %v1569 = vld [vmem:[#allocation11 + $0xa8] sm:$0xf]
            %v1570 = vld [vmem:[#allocation11 + $0xac] sm:$0xf]
            %v1571 = vld [vmem:[#allocation11 + $0xb0] sm:$0xf]
            %v1572 = vld [vmem:[#allocation11 + $0xb4] sm:$0xf]
            %v1573 = vld [vmem:[#allocation11 + $0xb8] sm:$0xf]
            %v1574 = vld [vmem:[#allocation11 + $0xbc] sm:$0xf]
            %v1575 = vld [vmem:[#allocation11 + $0xc0] sm:$0xf]
            %v1576 = vld [vmem:[#allocation11 + $0xc4] sm:$0xf]
            %v1577 = vld [vmem:[#allocation11 + $0xc8] sm:$0xf]
            %v1578 = vld [vmem:[#allocation11 + $0xcc] sm:$0xf]
            %v1579 = vld [vmem:[#allocation11 + $0xd0] sm:$0xf]
            %v1580 = vld [vmem:[#allocation11 + $0xd4] sm:$0xf]
            %v1581 = vld [vmem:[#allocation11 + $0xd8] sm:$0xf]
            %v1582 = vld [vmem:[#allocation11 + $0xdc] sm:$0xf]
            %v1583 = vld [vmem:[#allocation11 + $0xe0] sm:$0xf]
            %v1584 = vld [vmem:[#allocation11 + $0xe4] sm:$0xf]
            %v1585 = vld [vmem:[#allocation11 + $0xe8] sm:$0xf]
            %v1586 = vld [vmem:[#allocation11 + $0xec] sm:$0xf]
            %v1587 = vld [vmem:[#allocation11 + $0xf0] sm:$0xf]
            %v1588 = vld [vmem:[#allocation11 + $0xf4] sm:$0xf]
            %v1589 = vld [vmem:[#allocation11 + $0xf8] sm:$0xf]
            %v1590 = vld [vmem:[#allocation11 + $0xfc] sm:$0xf]
            %v1591 = vld [vmem:[#allocation11 + $0x100] sm:$0xf]
            %v1592 = vld [vmem:[#allocation11 + $0x104] sm:$0xf]
            %v1593 = vld [vmem:[#allocation11 + $0x108] sm:$0xf]
            %v1594 = vld [vmem:[#allocation11 + $0x10c] sm:$0xf]
            %v1595 = vld [vmem:[#allocation11 + $0x110] sm:$0xf]
            %v1596 = vld [vmem:[#allocation11 + $0x114] sm:$0xf]
            %v1597 = vld [vmem:[#allocation11 + $0x118] sm:$0xf]
            %v1598 = vld [vmem:[#allocation11 + $0x11c] sm:$0xf]
            %v1599 = vld [vmem:[#allocation11 + $0x120] sm:$0xf]
            %v1600 = vld [vmem:[#allocation11 + $0x124] sm:$0xf]
            %v1601 = vld [vmem:[#allocation11 + $0x128] sm:$0xf]
            %v1602 = vld [vmem:[#allocation11 + $0x12c] sm:$0xf]
            %v1603 = vld [vmem:[#allocation11 + $0x130] sm:$0xf]
            %v1604 = vld [vmem:[#allocation11 + $0x134] sm:$0xf]
            %v1605 = vld [vmem:[#allocation11 + $0x138] sm:$0xf]
            %v1606 = vld [vmem:[#allocation11 + $0x13c] sm:$0xf]
            %v1607 = vld [vmem:[#allocation11 + $0x140] sm:$0xf]
            %v1608 = vld [vmem:[#allocation11 + $0x144] sm:$0xf]
            %v1609 = vld [vmem:[#allocation11 + $0x148] sm:$0xf]
            %v1610 = vld [vmem:[#allocation11 + $0x14c] sm:$0xf]
            %v1611 = vld [vmem:[#allocation11 + $0x150] sm:$0xf]
            %v1612 = vld [vmem:[#allocation11 + $0x154] sm:$0xf]
            %v1613 = vld [vmem:[#allocation11 + $0x158] sm:$0xf]
            %v1614 = vld [vmem:[#allocation11 + $0x15c] sm:$0xf]
            %v1615 = vld [vmem:[#allocation11 + $0x160] sm:$0xf]
            %v1616 = vld [vmem:[#allocation11 + $0x164] sm:$0xf]
            %v1617 = vld [vmem:[#allocation11 + $0x168] sm:$0xf]
            %v1618 = vld [vmem:[#allocation11 + $0x16c] sm:$0xf]
            %v1619 = vld [vmem:[#allocation11 + $0x170] sm:$0xf]
            %v1620 = vld [vmem:[#allocation11 + $0x174] sm:$0xf]
            %v1621 = vld [vmem:[#allocation11 + $0x178] sm:$0xf]
            %v1622 = vld [vmem:[#allocation11 + $0x17c] sm:$0xf]
            %v1623 = vld [vmem:[#allocation11 + $0x180] sm:$0xf]
            %v1624 = vld [vmem:[#allocation11 + $0x184] sm:$0xf]
            %v1625 = vld [vmem:[#allocation11 + $0x188] sm:$0xf]
            %v1626 = vld [vmem:[#allocation11 + $0x18c] sm:$0xf]
            %v1627 = vld [vmem:[#allocation11 + $0x190] sm:$0xf]
            %v1628 = vld [vmem:[#allocation11 + $0x194] sm:$0xf]
            %v1629 = vld [vmem:[#allocation11 + $0x198] sm:$0xf]
            %v1630 = vld [vmem:[#allocation11 + $0x19c] sm:$0xf]
            %v1631 = vld [vmem:[#allocation11 + $0x1a0] sm:$0xf]
            %v1632 = vld [vmem:[#allocation11 + $0x1a4] sm:$0xf]
            %v1633 = vld [vmem:[#allocation11 + $0x1a8] sm:$0xf]
            %v1634 = vld [vmem:[#allocation11 + $0x1ac] sm:$0xf]
            %v1635 = vld [vmem:[#allocation11 + $0x1b0] sm:$0xf]
            %v1636 = vld [vmem:[#allocation11 + $0x1b4] sm:$0xf]
            %v1637 = vld [vmem:[#allocation11 + $0x1b8] sm:$0xf]
            %v1638 = vld [vmem:[#allocation11 + $0x1bc] sm:$0xf]
            %v1639 = vld [vmem:[#allocation11 + $0x1c0] sm:$0xf]
            %v1640 = vld [vmem:[#allocation11 + $0x1c4] sm:$0xf]
            %v1641 = vld [vmem:[#allocation11 + $0x1c8] sm:$0xf]
            %v1642 = vld [vmem:[#allocation11 + $0x1cc] sm:$0xf]
            %v1643 = vld [vmem:[#allocation11 + $0x1d0] sm:$0xf]
            %v1644 = vld [vmem:[#allocation11 + $0x1d4] sm:$0xf]
            %v1645 = vld [vmem:[#allocation11 + $0x1d8] sm:$0xf]
            %v1646 = vld [vmem:[#allocation11 + $0x1dc] sm:$0xf]
            %v1647 = vld [vmem:[#allocation11 + $0x1e0] sm:$0xf]
            %v1648 = vld [vmem:[#allocation11 + $0x1e4] sm:$0xf]
            %v1649 = vld [vmem:[#allocation11 + $0x1e8] sm:$0xf]
            %v1650 = vld [vmem:[#allocation11 + $0x1ec] sm:$0xf]
            %v1651 = vld [vmem:[#allocation11 + $0x1f0] sm:$0xf]
            %v1652 = vld [vmem:[#allocation11 + $0x1f4] sm:$0xf]
            %v1653 = vld [vmem:[#allocation11 + $0x1f8] sm:$0xf]
            %v1654 = vld [vmem:[#allocation11 + $0x1fc] sm:$0xf]
            %v1655 = vld [vmem:[%s5] sm:$0x1]
            %v1657 = vlaneseq
            %v1658 = vshrl.u32 %v1657, 7
            %v1659 = vsub.s32 0, %v1658
            %v1660 = vrot.slane %v1655, %v1659
            %v1790 = vunpack.c.l.b16 %v1527
            %v1791 = vunpack.c.l.b16 %v1528
            %v1792 = vunpack.c.l.b16 %v1529
            %v1793 = vunpack.c.l.b16 %v1530
            %v1794 = vunpack.c.l.b16 %v1531
            %v1795 = vunpack.c.l.b16 %v1532
            %v1796 = vunpack.c.l.b16 %v1533
            %v1797 = vunpack.c.l.b16 %v1534
            %v1798 = vunpack.c.l.b16 %v1535
            %v1799 = vunpack.c.l.b16 %v1536
            %v1800 = vunpack.c.l.b16 %v1537
            %v1801 = vunpack.c.l.b16 %v1538
            %v1802 = vunpack.c.l.b16 %v1539
            %v1803 = vunpack.c.l.b16 %v1540
            %v1804 = vunpack.c.l.b16 %v1541
            %v1805 = vunpack.c.l.b16 %v1542
            %v1806 = vunpack.c.l.b16 %v1543
            %v1807 = vunpack.c.l.b16 %v1544
            %v1808 = vunpack.c.l.b16 %v1545
            %v1809 = vunpack.c.l.b16 %v1546
            %v1810 = vunpack.c.l.b16 %v1547
            %v1811 = vunpack.c.l.b16 %v1548
            %v1812 = vunpack.c.l.b16 %v1549
            %v1813 = vunpack.c.l.b16 %v1550
            %v1814 = vunpack.c.l.b16 %v1551
            %v1815 = vunpack.c.l.b16 %v1552
            %v1816 = vunpack.c.l.b16 %v1553
            %v1817 = vunpack.c.l.b16 %v1554
            %v1818 = vunpack.c.l.b16 %v1555
            %v1819 = vunpack.c.l.b16 %v1556
            %v1820 = vunpack.c.l.b16 %v1557
            %v1821 = vunpack.c.l.b16 %v1558
            %v1822 = vunpack.c.l.b16 %v1559
            %v1823 = vunpack.c.l.b16 %v1560
            %v1824 = vunpack.c.l.b16 %v1561
            %v1825 = vunpack.c.l.b16 %v1562
            %v1826 = vunpack.c.l.b16 %v1563
            %v1827 = vunpack.c.l.b16 %v1564
            %v1828 = vunpack.c.l.b16 %v1565
            %v1829 = vunpack.c.l.b16 %v1566
            %v1830 = vunpack.c.l.b16 %v1567
            %v1831 = vunpack.c.l.b16 %v1568
            %v1832 = vunpack.c.l.b16 %v1569
            %v1833 = vunpack.c.l.b16 %v1570
            %v1834 = vunpack.c.l.b16 %v1571
            %v1835 = vunpack.c.l.b16 %v1572
            %v1836 = vunpack.c.l.b16 %v1573
            %v1837 = vunpack.c.l.b16 %v1574
            %v1838 = vunpack.c.l.b16 %v1575
            %v1839 = vunpack.c.l.b16 %v1576
            %v1840 = vunpack.c.l.b16 %v1577
            %v1841 = vunpack.c.l.b16 %v1578
            %v1842 = vunpack.c.l.b16 %v1579
            %v1843 = vunpack.c.l.b16 %v1580
            %v1844 = vunpack.c.l.b16 %v1581
            %v1845 = vunpack.c.l.b16 %v1582
            %v1846 = vunpack.c.l.b16 %v1583
            %v1847 = vunpack.c.l.b16 %v1584
            %v1848 = vunpack.c.l.b16 %v1585
            %v1849 = vunpack.c.l.b16 %v1586
            %v1850 = vunpack.c.l.b16 %v1587
            %v1851 = vunpack.c.l.b16 %v1588
            %v1852 = vunpack.c.l.b16 %v1589
            %v1853 = vunpack.c.l.b16 %v1590
            %v1854 = vunpack.c.l.b16 %v1591
            %v1855 = vunpack.c.l.b16 %v1592
            %v1856 = vunpack.c.l.b16 %v1593
            %v1857 = vunpack.c.l.b16 %v1594
            %v1858 = vunpack.c.l.b16 %v1595
            %v1859 = vunpack.c.l.b16 %v1596
            %v1860 = vunpack.c.l.b16 %v1597
            %v1861 = vunpack.c.l.b16 %v1598
            %v1862 = vunpack.c.l.b16 %v1599
            %v1863 = vunpack.c.l.b16 %v1600
            %v1864 = vunpack.c.l.b16 %v1601
            %v1865 = vunpack.c.l.b16 %v1602
            %v1866 = vunpack.c.l.b16 %v1603
            %v1867 = vunpack.c.l.b16 %v1604
            %v1868 = vunpack.c.l.b16 %v1605
            %v1869 = vunpack.c.l.b16 %v1606
            %v1870 = vunpack.c.l.b16 %v1607
            %v1871 = vunpack.c.l.b16 %v1608
            %v1872 = vunpack.c.l.b16 %v1609
            %v1873 = vunpack.c.l.b16 %v1610
            %v1874 = vunpack.c.l.b16 %v1611
            %v1875 = vunpack.c.l.b16 %v1612
            %v1876 = vunpack.c.l.b16 %v1613
            %v1877 = vunpack.c.l.b16 %v1614
            %v1878 = vunpack.c.l.b16 %v1615
            %v1879 = vunpack.c.l.b16 %v1616
            %v1880 = vunpack.c.l.b16 %v1617
            %v1881 = vunpack.c.l.b16 %v1618
            %v1882 = vunpack.c.l.b16 %v1619
            %v1883 = vunpack.c.l.b16 %v1620
            %v1884 = vunpack.c.l.b16 %v1621
            %v1885 = vunpack.c.l.b16 %v1622
            %v1886 = vunpack.c.l.b16 %v1623
            %v1887 = vunpack.c.l.b16 %v1624
            %v1888 = vunpack.c.l.b16 %v1625
            %v1889 = vunpack.c.l.b16 %v1626
            %v1890 = vunpack.c.l.b16 %v1627
            %v1891 = vunpack.c.l.b16 %v1628
            %v1892 = vunpack.c.l.b16 %v1629
            %v1893 = vunpack.c.l.b16 %v1630
            %v1894 = vunpack.c.l.b16 %v1631
            %v1895 = vunpack.c.l.b16 %v1632
            %v1896 = vunpack.c.l.b16 %v1633
            %v1897 = vunpack.c.l.b16 %v1634
            %v1898 = vunpack.c.l.b16 %v1635
            %v1899 = vunpack.c.l.b16 %v1636
            %v1900 = vunpack.c.l.b16 %v1637
            %v1901 = vunpack.c.l.b16 %v1638
            %v1902 = vunpack.c.l.b16 %v1639
            %v1903 = vunpack.c.l.b16 %v1640
            %v1904 = vunpack.c.l.b16 %v1641
            %v1905 = vunpack.c.l.b16 %v1642
            %v1906 = vunpack.c.l.b16 %v1643
            %v1907 = vunpack.c.l.b16 %v1644
            %v1908 = vunpack.c.l.b16 %v1645
            %v1909 = vunpack.c.l.b16 %v1646
            %v1910 = vunpack.c.l.b16 %v1647
            %v1911 = vunpack.c.l.b16 %v1648
            %v1912 = vunpack.c.l.b16 %v1649
            %v1913 = vunpack.c.l.b16 %v1650
            %v1914 = vunpack.c.l.b16 %v1651
            %v1915 = vunpack.c.l.b16 %v1652
            %v1916 = vunpack.c.l.b16 %v1653
            %v1917 = vunpack.c.l.b16 %v1654
            %v1918 = vpack.c.b16 %v1791, %v1790
            %v1919 = vpack.c.b16 %v1793, %v1792
            %v1920 = vpack.c.b16 %v1795, %v1794
            %v1921 = vpack.c.b16 %v1797, %v1796
            %v1922 = vpack.c.b16 %v1799, %v1798
            %v1923 = vpack.c.b16 %v1801, %v1800
            %v1924 = vpack.c.b16 %v1803, %v1802
            %v1925 = vpack.c.b16 %v1805, %v1804
            %v1926 = vpack.c.b16 %v1807, %v1806
            %v1927 = vpack.c.b16 %v1809, %v1808
            %v1928 = vpack.c.b16 %v1811, %v1810
            %v1929 = vpack.c.b16 %v1813, %v1812
            %v1930 = vpack.c.b16 %v1815, %v1814
            %v1931 = vpack.c.b16 %v1817, %v1816
            %v1932 = vpack.c.b16 %v1819, %v1818
            %v1933 = vpack.c.b16 %v1821, %v1820
            %v1934 = vpack.c.b16 %v1823, %v1822
            %v1935 = vpack.c.b16 %v1825, %v1824
            %v1936 = vpack.c.b16 %v1827, %v1826
            %v1937 = vpack.c.b16 %v1829, %v1828
            %v1938 = vpack.c.b16 %v1831, %v1830
            %v1939 = vpack.c.b16 %v1833, %v1832
            %v1940 = vpack.c.b16 %v1835, %v1834
            %v1941 = vpack.c.b16 %v1837, %v1836
            %v1942 = vpack.c.b16 %v1839, %v1838
            %v1943 = vpack.c.b16 %v1841, %v1840
            %v1944 = vpack.c.b16 %v1843, %v1842
            %v1945 = vpack.c.b16 %v1845, %v1844
            %v1946 = vpack.c.b16 %v1847, %v1846
            %v1947 = vpack.c.b16 %v1849, %v1848
            %v1948 = vpack.c.b16 %v1851, %v1850
            %v1949 = vpack.c.b16 %v1853, %v1852
            %v1950 = vpack.c.b16 %v1855, %v1854
            %v1951 = vpack.c.b16 %v1857, %v1856
            %v1952 = vpack.c.b16 %v1859, %v1858
            %v1953 = vpack.c.b16 %v1861, %v1860
            %v1954 = vpack.c.b16 %v1863, %v1862
            %v1955 = vpack.c.b16 %v1865, %v1864
            %v1956 = vpack.c.b16 %v1867, %v1866
            %v1957 = vpack.c.b16 %v1869, %v1868
            %v1958 = vpack.c.b16 %v1871, %v1870
            %v1959 = vpack.c.b16 %v1873, %v1872
            %v1960 = vpack.c.b16 %v1875, %v1874
            %v1961 = vpack.c.b16 %v1877, %v1876
            %v1962 = vpack.c.b16 %v1879, %v1878
            %v1963 = vpack.c.b16 %v1881, %v1880
            %v1964 = vpack.c.b16 %v1883, %v1882
            %v1965 = vpack.c.b16 %v1885, %v1884
            %v1966 = vpack.c.b16 %v1887, %v1886
            %v1967 = vpack.c.b16 %v1889, %v1888
            %v1968 = vpack.c.b16 %v1891, %v1890
            %v1969 = vpack.c.b16 %v1893, %v1892
            %v1970 = vpack.c.b16 %v1895, %v1894
            %v1971 = vpack.c.b16 %v1897, %v1896
            %v1972 = vpack.c.b16 %v1899, %v1898
            %v1973 = vpack.c.b16 %v1901, %v1900
            %v1974 = vpack.c.b16 %v1903, %v1902
            %v1975 = vpack.c.b16 %v1905, %v1904
            %v1976 = vpack.c.b16 %v1907, %v1906
            %v1977 = vpack.c.b16 %v1909, %v1908
            %v1978 = vpack.c.b16 %v1911, %v1910
            %v1979 = vpack.c.b16 %v1913, %v1912
            %v1980 = vpack.c.b16 %v1915, %v1914
            %v1981 = vpack.c.b16 %v1917, %v1916
            %2046 = vmatprep.subr.bf16.mxu0 0
            %2047 = vmatpush1.bf16.msra.mxu0 %v1925
            %2048 = vmatprep.subr.bf16.mxu0 0
            %2049 = vmatpush1.bf16.msra.mxu0 %v1924
            %2050 = vmatprep.subr.bf16.mxu0 0
            %2051 = vmatpush1.bf16.msra.mxu0 %v1923
            %2052 = vmatprep.subr.bf16.mxu0 0
            %2053 = vmatpush1.bf16.msra.mxu0 %v1922
            %2054 = vmatprep.subr.bf16.mxu0 0
            %2055 = vmatpush1.bf16.msra.mxu0 %v1921
            %2056 = vmatprep.subr.bf16.mxu0 0
            %2057 = vmatpush1.bf16.msra.mxu0 %v1920
            %2058 = vmatprep.subr.bf16.mxu0 0
            %2059 = vmatpush1.bf16.msra.mxu0 %v1919
            %2060 = vmatprep.subr.bf16.mxu0 0
            %2061 = vmatpush1.bf16.msra.mxu0 %v1918
            %2062 = vmatprep.subr.bf16.mxu0 0
            %2063 = vmatpush2.bf16.msra.mxu0 %v1933
            %2064 = vmatprep.subr.bf16.mxu0 0
            %2065 = vmatpush2.bf16.msra.mxu0 %v1932
            %2066 = vmatprep.subr.bf16.mxu0 0
            %2067 = vmatpush2.bf16.msra.mxu0 %v1931
            %2068 = vmatprep.subr.bf16.mxu0 0
            %2069 = vmatpush2.bf16.msra.mxu0 %v1930
            %2070 = vmatprep.subr.bf16.mxu0 0
            %2071 = vmatpush2.bf16.msra.mxu0 %v1929
            %2072 = vmatprep.subr.bf16.mxu0 0
            %2073 = vmatpush2.bf16.msra.mxu0 %v1928
            %2074 = vmatprep.subr.bf16.mxu0 0
            %2075 = vmatpush2.bf16.msra.mxu0 %v1927
            %2076 = vmatprep.subr.bf16.mxu0 0
            %2077 = vmatpush2.bf16.msra.mxu0 %v1926
            %2078 = vmatprep.mubr.bf16.mxu0 %v1520
            %2079 = vmatmul.mubr.bf16.gmra.mxu0 %v1519
            %v2080 = vpop.f32.mrf.mxu0
            %v2081 = vadd.f32 %v1660, %v2080
            %v2082 = vpop.f32.mrf.mxu0
            %v2083 = vpop.f32.mrf.mxu0
            %v2084 = vpop.f32.mrf.mxu0
            %2085 = vdwg.mxu0
            %2086 = vmatprep.subr.bf16.mxu0 0
            %2087 = vmatpush1.bf16.msra.mxu0 %v1941
            %2088 = vmatprep.subr.bf16.mxu0 0
            %2089 = vmatpush1.bf16.msra.mxu0 %v1940
            %2090 = vmatprep.subr.bf16.mxu0 0
            %2091 = vmatpush1.bf16.msra.mxu0 %v1939
            %2092 = vmatprep.subr.bf16.mxu0 0
            %2093 = vmatpush1.bf16.msra.mxu0 %v1938
            %2094 = vmatprep.subr.bf16.mxu0 0
            %2095 = vmatpush1.bf16.msra.mxu0 %v1937
            %2096 = vmatprep.subr.bf16.mxu0 0
            %2097 = vmatpush1.bf16.msra.mxu0 %v1936
            %2098 = vmatprep.subr.bf16.mxu0 0
            %2099 = vmatpush1.bf16.msra.mxu0 %v1935
            %2100 = vmatprep.subr.bf16.mxu0 0
            %2101 = vmatpush1.bf16.msra.mxu0 %v1934
            %2102 = vmatprep.subr.bf16.mxu0 0
            %2103 = vmatpush2.bf16.msra.mxu0 %v1949
            %2104 = vmatprep.subr.bf16.mxu0 0
            %2105 = vmatpush2.bf16.msra.mxu0 %v1948
            %2106 = vmatprep.subr.bf16.mxu0 0
            %2107 = vmatpush2.bf16.msra.mxu0 %v1947
            %2108 = vmatprep.subr.bf16.mxu0 0
            %2109 = vmatpush2.bf16.msra.mxu0 %v1946
            %2110 = vmatprep.subr.bf16.mxu0 0
            %2111 = vmatpush2.bf16.msra.mxu0 %v1945
            %2112 = vmatprep.subr.bf16.mxu0 0
            %2113 = vmatpush2.bf16.msra.mxu0 %v1944
            %2114 = vmatprep.subr.bf16.mxu0 0
            %2115 = vmatpush2.bf16.msra.mxu0 %v1943
            %2116 = vmatprep.subr.bf16.mxu0 0
            %2117 = vmatpush2.bf16.msra.mxu0 %v1942
            %2118 = vmatprep.mubr.bf16.mxu0 %v1522
            %2119 = vmatmul.mubr.bf16.gmra.mxu0 %v1521
            %v2120 = vpop.f32.mrf.mxu0
            %v2121 = vadd.f32 %v2081, %v2120
            %v2122 = vpop.f32.mrf.mxu0
            %v2123 = vpop.f32.mrf.mxu0
            %v2124 = vpop.f32.mrf.mxu0
            %2125 = vdwg.mxu0
            %2126 = vmatprep.subr.bf16.mxu0 0
            %2127 = vmatpush1.bf16.msra.mxu0 %v1957
            %2128 = vmatprep.subr.bf16.mxu0 0
            %2129 = vmatpush1.bf16.msra.mxu0 %v1956
            %2130 = vmatprep.subr.bf16.mxu0 0
            %2131 = vmatpush1.bf16.msra.mxu0 %v1955
            %2132 = vmatprep.subr.bf16.mxu0 0
            %2133 = vmatpush1.bf16.msra.mxu0 %v1954
            %2134 = vmatprep.subr.bf16.mxu0 0
            %2135 = vmatpush1.bf16.msra.mxu0 %v1953
            %2136 = vmatprep.subr.bf16.mxu0 0
            %2137 = vmatpush1.bf16.msra.mxu0 %v1952
            %2138 = vmatprep.subr.bf16.mxu0 0
            %2139 = vmatpush1.bf16.msra.mxu0 %v1951
            %2140 = vmatprep.subr.bf16.mxu0 0
            %2141 = vmatpush1.bf16.msra.mxu0 %v1950
            %2142 = vmatprep.subr.bf16.mxu0 0
            %2143 = vmatpush2.bf16.msra.mxu0 %v1965
            %2144 = vmatprep.subr.bf16.mxu0 0
            %2145 = vmatpush2.bf16.msra.mxu0 %v1964
            %2146 = vmatprep.subr.bf16.mxu0 0
            %2147 = vmatpush2.bf16.msra.mxu0 %v1963
            %2148 = vmatprep.subr.bf16.mxu0 0
            %2149 = vmatpush2.bf16.msra.mxu0 %v1962
            %2150 = vmatprep.subr.bf16.mxu0 0
            %2151 = vmatpush2.bf16.msra.mxu0 %v1961
            %2152 = vmatprep.subr.bf16.mxu0 0
            %2153 = vmatpush2.bf16.msra.mxu0 %v1960
            %2154 = vmatprep.subr.bf16.mxu0 0
            %2155 = vmatpush2.bf16.msra.mxu0 %v1959
            %2156 = vmatprep.subr.bf16.mxu0 0
            %2157 = vmatpush2.bf16.msra.mxu0 %v1958
            %2158 = vmatprep.mubr.bf16.mxu0 %v1524
            %2159 = vmatmul.mubr.bf16.gmra.mxu0 %v1523
            %v2160 = vpop.f32.mrf.mxu0
            %v2161 = vadd.f32 %v2121, %v2160
            %v2162 = vpop.f32.mrf.mxu0
            %v2163 = vpop.f32.mrf.mxu0
            %v2164 = vpop.f32.mrf.mxu0
            %2165 = vdwg.mxu0
            %2166 = vmatprep.subr.bf16.mxu0 0
            %2167 = vmatpush1.bf16.msra.mxu0 %v1973
            %2168 = vmatprep.subr.bf16.mxu0 0
            %2169 = vmatpush1.bf16.msra.mxu0 %v1972
            %2170 = vmatprep.subr.bf16.mxu0 0
            %2171 = vmatpush1.bf16.msra.mxu0 %v1971
            %2172 = vmatprep.subr.bf16.mxu0 0
            %2173 = vmatpush1.bf16.msra.mxu0 %v1970
            %2174 = vmatprep.subr.bf16.mxu0 0
            %2175 = vmatpush1.bf16.msra.mxu0 %v1969
            %2176 = vmatprep.subr.bf16.mxu0 0
            %2177 = vmatpush1.bf16.msra.mxu0 %v1968
            %2178 = vmatprep.subr.bf16.mxu0 0
            %2179 = vmatpush1.bf16.msra.mxu0 %v1967
            %2180 = vmatprep.subr.bf16.mxu0 0
            %2181 = vmatpush1.bf16.msra.mxu0 %v1966
            %2182 = vmatprep.subr.bf16.mxu0 0
            %2183 = vmatpush2.bf16.msra.mxu0 %v1981
            %2184 = vmatprep.subr.bf16.mxu0 0
            %2185 = vmatpush2.bf16.msra.mxu0 %v1980
            %2186 = vmatprep.subr.bf16.mxu0 0
            %2187 = vmatpush2.bf16.msra.mxu0 %v1979
            %2188 = vmatprep.subr.bf16.mxu0 0
            %2189 = vmatpush2.bf16.msra.mxu0 %v1978
            %2190 = vmatprep.subr.bf16.mxu0 0
            %2191 = vmatpush2.bf16.msra.mxu0 %v1977
            %2192 = vmatprep.subr.bf16.mxu0 0
            %2193 = vmatpush2.bf16.msra.mxu0 %v1976
            %2194 = vmatprep.subr.bf16.mxu0 0
            %2195 = vmatpush2.bf16.msra.mxu0 %v1975
            %2196 = vmatprep.subr.bf16.mxu0 0
            %2197 = vmatpush2.bf16.msra.mxu0 %v1974
            %2198 = vmatprep.mubr.bf16.mxu0 %v1526
            %2199 = vmatmul.mubr.bf16.gmra.mxu0 %v1525
            %v2200 = vpop.f32.mrf.mxu0
            %v2201 = vadd.f32 %v2161, %v2200
            %v2202 = vpop.f32.mrf.mxu0
            %v2203 = vpop.f32.mrf.mxu0
            %v2204 = vpop.f32.mrf.mxu0
            %2205 = vdwg.mxu0
            %v2206 = vmax.f32 %v2201, 0.0
            %v2207 = vld [vmem:[%s6] sm:$0xff]
            %v2208 = vld [vmem:[%s6 + $0x8] sm:$0xff]
            %v2209 = vld [vmem:[%s6 + $0x10] sm:$0xff]
            %v2210 = vld [vmem:[%s6 + $0x18] sm:$0xff]
            %v2211 = vld [vmem:[%s6 + $0x20] sm:$0xff]
            %v2212 = vld [vmem:[%s6 + $0x28] sm:$0xff]
            %v2213 = vld [vmem:[%s6 + $0x30] sm:$0xff]
            %v2214 = vld [vmem:[%s6 + $0x38] sm:$0xff]
            %v2215 = vld [vmem:[%s6 + $0x40] sm:$0xff]
            %v2216 = vld [vmem:[%s6 + $0x48] sm:$0xff]
            %v2217 = vld [vmem:[%s6 + $0x50] sm:$0xff]
            %v2218 = vld [vmem:[%s6 + $0x58] sm:$0xff]
            %v2219 = vld [vmem:[%s6 + $0x60] sm:$0xff]
            %v2220 = vld [vmem:[%s6 + $0x68] sm:$0xff]
            %v2221 = vld [vmem:[%s6 + $0x70] sm:$0xff]
            %v2222 = vld [vmem:[%s6 + $0x78] sm:$0xff]
            %v2223 = vld [vmem:[#allocation5] sm:$0x1]
            %v2225 = vlaneseq
            %v2226 = vshrl.u32 %v2225, 7
            %v2227 = vsub.s32 0, %v2226
            %v2228 = vrot.slane %v2223, %v2227
            %2230 = vmatprep.subr.mxu0 0.0
            %2231 = vmatpush1.msra.mxu0 %v2222
            %2232 = vmatprep.subr.mxu0 0.0
            %2233 = vmatpush1.msra.mxu0 %v2221
            %2234 = vmatprep.subr.mxu0 0.0
            %2235 = vmatpush1.msra.mxu0 %v2220
            %2236 = vmatprep.subr.mxu0 0.0
            %2237 = vmatpush1.msra.mxu0 %v2219
            %2238 = vmatprep.subr.mxu0 0.0
            %2239 = vmatpush1.msra.mxu0 %v2218
            %2240 = vmatprep.subr.mxu0 0.0
            %2241 = vmatpush1.msra.mxu0 %v2217
            %2242 = vmatprep.subr.mxu0 0.0
            %2243 = vmatpush1.msra.mxu0 %v2216
            %2244 = vmatprep.subr.mxu0 0.0
            %2245 = vmatpush1.msra.mxu0 %v2215
            %2246 = vmatprep.subr.mxu0 0.0
            %2247 = vmatpush1.msra.mxu0 %v2214
            %2248 = vmatprep.subr.mxu0 0.0
            %2249 = vmatpush1.msra.mxu0 %v2213
            %2250 = vmatprep.subr.mxu0 0.0
            %2251 = vmatpush1.msra.mxu0 %v2212
            %2252 = vmatprep.subr.mxu0 0.0
            %2253 = vmatpush1.msra.mxu0 %v2211
            %2254 = vmatprep.subr.mxu0 0.0
            %2255 = vmatpush1.msra.mxu0 %v2210
            %2256 = vmatprep.subr.mxu0 0.0
            %2257 = vmatpush1.msra.mxu0 %v2209
            %2258 = vmatprep.subr.mxu0 0.0
            %2259 = vmatpush1.msra.mxu0 %v2208
            %2260 = vmatprep.subr.mxu0 0.0
            %2261 = vmatpush1.msra.mxu0 %v2207
            %2262 = vmatprep.subr.mxu0 0.0
            %2263 = vmatpush2.msra.mxu0 0.0
            %2264 = vmatprep.subr.mxu0 0.0
            %2265 = vmatpush2.msra.mxu0 0.0
            %2266 = vmatprep.subr.mxu0 0.0
            %2267 = vmatpush2.msra.mxu0 0.0
            %2268 = vmatprep.subr.mxu0 0.0
            %2269 = vmatpush2.msra.mxu0 0.0
            %2270 = vmatprep.subr.mxu0 0.0
            %2271 = vmatpush2.msra.mxu0 0.0
            %2272 = vmatprep.subr.mxu0 0.0
            %2273 = vmatpush2.msra.mxu0 0.0
            %2274 = vmatprep.subr.mxu0 0.0
            %2275 = vmatpush2.msra.mxu0 0.0
            %2276 = vmatprep.subr.mxu0 0.0
            %2277 = vmatpush2.msra.mxu0 0.0
            %2278 = vmatprep.subr.mxu0 0.0
            %2279 = vmatpush2.msra.mxu0 0.0
            %2280 = vmatprep.subr.mxu0 0.0
            %2281 = vmatpush2.msra.mxu0 0.0
            %2282 = vmatprep.subr.mxu0 0.0
            %2283 = vmatpush2.msra.mxu0 0.0
            %2284 = vmatprep.subr.mxu0 0.0
            %2285 = vmatpush2.msra.mxu0 0.0
            %2286 = vmatprep.subr.mxu0 0.0
            %2287 = vmatpush2.msra.mxu0 0.0
            %2288 = vmatprep.subr.mxu0 0.0
            %2289 = vmatpush2.msra.mxu0 0.0
            %2290 = vmatprep.subr.mxu0 0.0
            %2291 = vmatpush2.msra.mxu0 0.0
            %2292 = vmatprep.subr.mxu0 0.0
            %2293 = vmatpush2.msra.mxu0 0.0
            %2294 = vmatprep.mubr.f32.mxu0 0.0
            %2295 = vmatmul.mubr.f32.gmra.mxu0 %v2206
            %v2296 = vpop.f32.mrf.mxu0
            %v2297 = vadd.f32 %v2228, %v2296
            %v2298 = vpop.f32.mrf.mxu0
            %2299 = vdwg.mxu0
            %v2300 = vmax.f32 %v2297, 0.0
            %vm2301 = vcmask 1024
            %2302 = vst.msk [vmem:[%s8] sm:$0x3] %vm2301, %v2300
          $region122: #{_forward.1} parent=117 // pred_fallthru
            _
        $region118: #{_forward.1} parent=85 // pred_fallthru
          _
        // Predicated region
        $region123: #{_forward.1} parent=85 // pred_check
          %p2303 = pneg %p239
        $region124: #{_forward.1} parent=85 // pred_check_branch
          %2305 = sbr.rel (%p2303) target = $region126
        $region125: #{_forward.1} parent=85 // pred_region
          _
        $region126: #{_forward.1} parent=85 // pred_fallthru
          _
        // Predicated region
        $region127: #{_forward.1} parent=85 // pred_check
          %p2306 = pneg %p239
        $region128: #{_forward.1} parent=85 // pred_check_branch
          %2308 = sbr.rel (%p2306) target = $region130
        $region129: #{_forward.1} parent=85 // pred_region
          _
        $region130: #{_forward.1} parent=85 // pred_fallthru
          _
      $region86: #{_forward.1} parent=5 // pred_fallthru
        _
      %p2309 = scmp.le.s32.totalorder 2, %s22
      // Predicated region
      $region131: #{_forward.1} parent=5 // pred_check
        %p2310 = pneg %p2309
      $region132: #{_forward.1} parent=5 // pred_check_branch
        %2312 = sbr.rel (%p2310) target = $region134
      $region133: #{_forward.1} parent=5 // pred_region
        %s2313 = ssub.s32 %s22, 2
      $region134: #{_forward.1} parent=5 // pred_fallthru
        _
    $region6: #{_forward.1} parent=1 // loop_footer
      %s26 = sadd.s32 1, %s22
    $region7: #{_forward.1} parent=1 // loop_footer_branch
      %21 = sbr.rel target = $region3
    $region8: #{_forward.1} parent=1 // loop_exit
      _
    %2314 = vsyncpa [#allocation8], 1
    %s2315 = scalar_lea.sflag [#allocation8], 1
    %2316 = vsyncpa %s2315, 1
    %2317 = vsyncpa [#allocation10], 1
    %s2318 = scalar_lea.sflag [#allocation10], 1
    %2319 = vsyncpa %s2318, 1

</llo_original>
